<compile_context>
chip_gen: v7x
topology: tpu7x:2x2x1
jax: 0.10.0
libtpu: 0.0.40
codegen_flags: <defaults>
</compile_context>

<pallas_src>
import math
import functools

import jax
import jax.numpy as jnp
from jax import lax
from jax.experimental import pallas as pl
from jax.experimental.pallas import tpu as pltpu

_MASK_VALUE = -1e30  # large finite negative: no NaN even if a row were fully masked


def _pick_tile(dim, preferred):
    if dim <= preferred:
        return dim
    if dim % preferred == 0:
        return preferred
    return dim  # fall back to the full (untiled) dimension — always correct


# ---------------------------------------------------------------------------
# Linear kernel: y = x @ W + b, grid (M//tm, N//tn, K//tk), f32 accumulator.
# ---------------------------------------------------------------------------
def _linear_kernel(x_ref, w_ref, b_ref, o_ref, acc_ref):
    @pl.when(pl.program_id(2) == 0)
    def _():
        acc_ref[...] = jnp.zeros_like(acc_ref)

    acc_ref[...] += jnp.dot(x_ref[...], w_ref[...],
                            preferred_element_type=jnp.float32)

    @pl.when(pl.program_id(2) == pl.num_programs(2) - 1)
    def _():
        o_ref[...] = (acc_ref[...] + b_ref[...]).astype(o_ref.dtype)


def _linear(x, w, b):
    M, K = x.shape
    K2, N = w.shape
    assert K == K2 and b.shape == (1, N)
    tm = _pick_tile(M, 256)
    tn = _pick_tile(N, 256)
    tk = _pick_tile(K, 512)
    return pl.pallas_call(
        _linear_kernel,
        out_shape=jax.ShapeDtypeStruct((M, N), x.dtype),
        grid=(M // tm, N // tn, K // tk),
        in_specs=[
            pl.BlockSpec((tm, tk), lambda i, j, k: (i, k)),
            pl.BlockSpec((tk, tn), lambda i, j, k: (k, j)),
            pl.BlockSpec((1, tn), lambda i, j, k: (0, j)),
        ],
        out_specs=pl.BlockSpec((tm, tn), lambda i, j, k: (i, j)),
        scratch_shapes=[pltpu.VMEM((tm, tn), jnp.float32)],
        compiler_params=pltpu.CompilerParams(
            dimension_semantics=("parallel", "parallel", "arbitrary")),
    )(x, w, b)


# ---------------------------------------------------------------------------
# Flash-attention kernel over (B*H, S, Dh): grid (bh-groups, q-tiles, kv-tiles)
# ---------------------------------------------------------------------------
def _flash_attn_kernel(q_ref, k_ref, v_ref, o_ref, m_sc, l_sc, acc_sc,
                       *, causal, tq, tkv):
    ki = pl.program_id(2)

    @pl.when(ki == 0)
    def _():
        m_sc[...] = jnp.full_like(m_sc, -jnp.inf)
        l_sc[...] = jnp.zeros_like(l_sc)
        acc_sc[...] = jnp.zeros_like(acc_sc)

    # (G, tq, Dh) x (G, tkv, Dh) -> (G, tq, tkv): heads/batch ride the batch dim.
    s = jnp.einsum("gqd,gkd->gqk", q_ref[...], k_ref[...],
                   preferred_element_type=jnp.float32)

    if causal:
        # Mask built once per (q-tile, kv-tile), shared by all heads in the block.
        row = pl.program_id(1) * tq + lax.broadcasted_iota(jnp.int32, s.shape, 1)
        col = ki * tkv + lax.broadcasted_iota(jnp.int32, s.shape, 2)
        s = jnp.where(col > row, _MASK_VALUE, s)

    m_prev = m_sc[...]
    m_new = jnp.maximum(m_prev, s.max(axis=-1, keepdims=True))
    alpha = jnp.exp(m_prev - m_new)
    p = jnp.exp(s - m_new)
    l_sc[...] = alpha * l_sc[...] + p.sum(axis=-1, keepdims=True)
    acc_sc[...] = alpha * acc_sc[...] + jnp.einsum(
        "gqk,gkd->gqd", p.astype(v_ref.dtype), v_ref[...],
        preferred_element_type=jnp.float32)
    m_sc[...] = m_new

    @pl.when(ki == pl.num_programs(2) - 1)
    def _():
        inv_l = pl.reciprocal(l_sc[...], approx=True)  # EUP slot, off the VALU path
        o_ref[...] = (acc_sc[...] * inv_l).astype(o_ref.dtype)


def _flash_attention(q, k, v, *, causal):
    BH, S, Dh = q.shape
    tq = _pick_tile(S, 128)
    tkv = _pick_tile(S, 128)

    # Group several (batch, head) pairs per block so the batched einsum feeds
    # the MXU more work per step, but keep >= 2 bh-group steps when possible so
    # both v7x TensorCores get parallel grid work.
    max_group = max(1, min(8, BH // 2))
    group = 1
    for cand in range(max_group, 0, -1):
        if BH % cand == 0:
            group = cand
            break

    kernel = functools.partial(_flash_attn_kernel, causal=causal, tq=tq, tkv=tkv)
    return pl.pallas_call(
        kernel,
        out_shape=jax.ShapeDtypeStruct((BH, S, Dh), q.dtype),
        grid=(BH // group, S // tq, S // tkv),
        in_specs=[
            pl.BlockSpec((group, tq, Dh), lambda g, qi, ki: (g, qi, 0)),
            pl.BlockSpec((group, tkv, Dh), lambda g, qi, ki: (g, ki, 0)),
            pl.BlockSpec((group, tkv, Dh), lambda g, qi, ki: (g, ki, 0)),
        ],
        out_specs=pl.BlockSpec((group, tq, Dh), lambda g, qi, ki: (g, qi, 0)),
        scratch_shapes=[
            pltpu.VMEM((group, tq, 1), jnp.float32),   # running max m
            pltpu.VMEM((group, tq, 1), jnp.float32),   # running sum l
            pltpu.VMEM((group, tq, Dh), jnp.float32),  # output accumulator
        ],
        compiler_params=pltpu.CompilerParams(
            dimension_semantics=("parallel", "parallel", "arbitrary")),
    )(q, k, v)


# ---------------------------------------------------------------------------
# Full SelfAttention forward (matches the PyTorch module).
# ---------------------------------------------------------------------------
@functools.partial(jax.jit, static_argnames=("n_heads", "causal"))
def self_attention(x, w_in, b_in, w_out, b_out, *, n_heads, causal=False):
    B, S, E = x.shape
    d_head = E // n_heads
    BH = B * n_heads

    # Fold the 1/sqrt(d_head) scale into the Q third of in_proj (one-time,
    # O(E*3E), outside the hot path) instead of scaling (S,S) scores per head.
    scale = jnp.asarray(1.0 / math.sqrt(d_head), x.dtype)
    w_in = w_in.at[:, :E].multiply(scale)
    b_in = b_in.at[:, :E].multiply(scale)

    # 1) fused in-projection over the whole (B*S, E) slab (fills the MXU M dim).
    qkv = _linear(x.reshape(B * S, E), w_in, b_in)            # (B*S, 3E)

    # 2) head split — layout plumbing in the wrapper (XLA), not in-kernel.
    qkv = qkv.reshape(B, S, 3, n_heads, d_head)

    def heads(t):  # (B, S, H, Dh) -> (B*H, S, Dh)
        return t.transpose(0, 2, 1, 3).reshape(BH, S, d_head)

    q = heads(qkv[:, :, 0])
    k = heads(qkv[:, :, 1])
    v = heads(qkv[:, :, 2])

    # 3) flash attention (online softmax, heads batched into the einsum).
    o = _flash_attention(q, k, v, causal=causal)              # (B*H, S, Dh)

    # 4) merge heads back and 5) out-projection on the (B*S, E) slab.
    o = o.reshape(B, n_heads, S, d_head).transpose(0, 2, 1, 3).reshape(B * S, E)
    y = _linear(o, w_out, b_out)
    return y.reshape(B, S, E)


def self_attention_ref(x, w_in, b_in, w_out, b_out, *, n_heads, causal=False):
    """Pure-JAX reference matching the PyTorch forward."""
    B, S, E = x.shape
    d_head = E // n_heads
    qkv = x @ w_in + b_in[0]
    q, k, v = jnp.split(qkv, 3, axis=-1)

    def to_heads(t):
        return t.reshape(B, S, n_heads, d_head).transpose(0, 2, 1, 3)

    q, k, v = to_heads(q), to_heads(k), to_heads(v)
    w = jnp.einsum("bhsd,bhtd->bhst", q, k)
    if causal:
        mask = jnp.triu(jnp.ones((S, S), dtype=bool), 1)
        w = jnp.where(mask, -jnp.inf, w)
    w = w / math.sqrt(d_head)
    w = jax.nn.softmax(w, axis=-1)
    o = jnp.einsum("bhst,bhtd->bhsd", w, v)
    o = o.transpose(0, 2, 1, 3).reshape(B, S, E)
    return o @ w_out + b_out[0]


if __name__ == "__main__":
    # Small shapes consistent with the module: B=2, S=8, E=32, n_heads=4 (d_head=8).
    B, S, E, H = 2, 8, 32, 4

    key = jax.random.PRNGKey(0)
    kx, k1, k2, k3, k4 = jax.random.split(key, 5)

    x = jax.random.normal(kx, (B, S, E), dtype=jnp.float32)
    bound = 1.0 / math.sqrt(E)
    w_in = jax.random.uniform(k1, (E, 3 * E), minval=-bound, maxval=bound, dtype=jnp.float32)
    b_in = jax.random.uniform(k2, (1, 3 * E), minval=-bound, maxval=bound, dtype=jnp.float32)
    w_out = jax.random.uniform(k3, (E, E), minval=-bound, maxval=bound, dtype=jnp.float32)
    b_out = jax.random.uniform(k4, (1, E), minval=-bound, maxval=bound, dtype=jnp.float32)

    # f32 path (approx-reciprocal softmax normalization -> slightly loose tolerance).
    out = jax.block_until_ready(
        self_attention(x, w_in, b_in, w_out, b_out, n_heads=H, causal=False))
    ref = self_attention_ref(x, w_in, b_in, w_out, b_out, n_heads=H, causal=False)
    assert out.shape == (B, S, E)
    assert jnp.allclose(out, ref, atol=2e-3, rtol=2e-3), "mismatch vs reference"

    out_c = jax.block_until_ready(
        self_attention(x, w_in, b_in, w_out, b_out, n_heads=H, causal=True))
    ref_c = self_attention_ref(x, w_in, b_in, w_out, b_out, n_heads=H, causal=True)
    assert jnp.allclose(out_c, ref_c, atol=2e-3, rtol=2e-3), "mismatch (causal)"

    # bf16 activations/weights, f32 accumulation (full-rate MXU on v5e/v6e/v7x).
    bf = lambda t: t.astype(jnp.bfloat16)
    out_b = jax.block_until_ready(
        self_attention(bf(x), bf(w_in), bf(b_in), bf(w_out), bf(b_out),
                       n_heads=H, causal=True))
    ref_b = self_attention_ref(*(bf(t).astype(jnp.float32)
                                 for t in (x, w_in, b_in, w_out, b_out)),
                               n_heads=H, causal=True)
    assert out_b.shape == (B, S, E)
    assert jnp.allclose(out_b.astype(jnp.float32), ref_b, atol=1e-1, rtol=1e-1), \
        "mismatch (bf16)"

    print("KERNEL_OK")
</pallas_src>

<mosaic_0001>
module attributes {stable_mosaic.version = 11 : i64} {
  func.func @_linear_kernel(%arg0: i32, %arg1: i32, %arg2: i32, %arg3: memref<16x32xf32, #tpu.memory_space<vmem>>, %arg4: memref<32x96xf32, #tpu.memory_space<vmem>>, %arg5: memref<1x96xf32, #tpu.memory_space<vmem>>, %arg6: memref<16x96xf32, #tpu.memory_space<vmem>>, %arg7: memref<16x96xf32, #tpu.memory_space<vmem>>) attributes {dimension_semantics = [#tpu.dimension_semantics<parallel>, #tpu.dimension_semantics<parallel>, #tpu.dimension_semantics<arbitrary>], iteration_bounds = array<i64: 1, 1, 1>, scalar_prefetch = 0 : i64, scratch_operands = 1 : i64, tpu.core_type = #tpu.core_type<tc>, window_params = [{transform_indices = @transform_0, window_bounds = array<i64: 16, 32>}, {transform_indices = @transform_1, window_bounds = array<i64: 32, 96>}, {transform_indices = @transform_2, window_bounds = array<i64: 1, 96>}, {transform_indices = @transform_3, window_bounds = array<i64: 16, 96>}]} {
    %c0_i32 = arith.constant 0 : i32
    %0 = arith.cmpi eq, %arg2, %c0_i32 : i32
    %1 = arith.extui %0 : i1 to i32
    %c0_i32_0 = arith.constant 0 : i32
    %2 = arith.cmpi ne, %1, %c0_i32_0 : i32
    scf.if %2 {
      %cst_10 = arith.constant 0.000000e+00 : f32
      %12 = vector.broadcast %cst_10 : f32 to vector<16x96xf32>
      %c0_11 = arith.constant 0 : index
      %c0_12 = arith.constant 0 : index
      %13 = vector.load %arg7[%c0_11, %c0_12] : memref<16x96xf32, #tpu.memory_space<vmem>>, vector<16x96xf32>
      tpu.vector_store %arg7[%c0_11, %c0_12], %12 {strides = array<i32>} : memref<16x96xf32, #tpu.memory_space<vmem>>, vector<16x96xf32>,
    } else {
    }
    %c0 = arith.constant 0 : index
    %c0_1 = arith.constant 0 : index
    %3 = vector.load %arg7[%c0, %c0_1] : memref<16x96xf32, #tpu.memory_space<vmem>>, vector<16x96xf32>
    %c0_2 = arith.constant 0 : index
    %c0_3 = arith.constant 0 : index
    %4 = vector.load %arg3[%c0_2, %c0_3] : memref<16x32xf32, #tpu.memory_space<vmem>>, vector<16x32xf32>
    %c0_4 = arith.constant 0 : index
    %c0_5 = arith.constant 0 : index
    %5 = vector.load %arg4[%c0_4, %c0_5] : memref<32x96xf32, #tpu.memory_space<vmem>>, vector<32x96xf32>
    %cst = arith.constant dense<0.000000e+00> : vector<16x96xf32>
    %6 = tpu.matmul %4, %5, %cst {dimension_numbers = #tpu.dot_dimension_numbers<[1], [0], [0], [1], [0, 0, 1, 1], [], []>} : vector<16x32xf32>, vector<32x96xf32>, vector<16x96xf32> -> vector<16x96xf32>
    %7 = arith.addf %3, %6 : vector<16x96xf32>
    %c0_6 = arith.constant 0 : index
    %c0_7 = arith.constant 0 : index
    %8 = vector.load %arg7[%c0_6, %c0_7] : memref<16x96xf32, #tpu.memory_space<vmem>>, vector<16x96xf32>
    tpu.vector_store %arg7[%c0_6, %c0_7], %7 {strides = array<i32>} : memref<16x96xf32, #tpu.memory_space<vmem>>, vector<16x96xf32>,
    %c0_i32_8 = arith.constant 0 : i32
    %9 = arith.cmpi eq, %arg2, %c0_i32_8 : i32
    %10 = arith.extui %9 : i1 to i32
    %c0_i32_9 = arith.constant 0 : i32
    %11 = arith.cmpi ne, %10, %c0_i32_9 : i32
    scf.if %11 {
      %c0_10 = arith.constant 0 : index
      %c0_11 = arith.constant 0 : index
      %12 = vector.load %arg7[%c0_10, %c0_11] : memref<16x96xf32, #tpu.memory_space<vmem>>, vector<16x96xf32>
      %c0_12 = arith.constant 0 : index
      %c0_13 = arith.constant 0 : index
      %13 = vector.load %arg5[%c0_12, %c0_13] : memref<1x96xf32, #tpu.memory_space<vmem>>, vector<1x96xf32>
      %14 = vector.broadcast %13 : vector<1x96xf32> to vector<16x96xf32>
      %15 = arith.addf %12, %14 : vector<16x96xf32>
      %c0_14 = arith.constant 0 : index
      %c0_15 = arith.constant 0 : index
      %16 = vector.load %arg6[%c0_14, %c0_15] : memref<16x96xf32, #tpu.memory_space<vmem>>, vector<16x96xf32>
      tpu.vector_store %arg6[%c0_14, %c0_15], %15 {strides = array<i32>} : memref<16x96xf32, #tpu.memory_space<vmem>>, vector<16x96xf32>,
    } else {
    }
    return
  }
  func.func @transform_0(%arg0: i32, %arg1: i32, %arg2: i32) -> (i32, i32) {
    %c0_i32 = arith.constant 0 : i32
    return %arg0, %arg2 : i32, i32
  }
  func.func @transform_1(%arg0: i32, %arg1: i32, %arg2: i32) -> (i32, i32) {
    %c0_i32 = arith.constant 0 : i32
    return %arg2, %arg1 : i32, i32
  }
  func.func @transform_2(%arg0: i32, %arg1: i32, %arg2: i32) -> (i32, i32) {
    %c0_i32 = arith.constant 0 : i32
    %c0_i32_0 = arith.constant 0 : i32
    return %c0_i32, %arg1 : i32, i32
  }
  func.func @transform_3(%arg0: i32, %arg1: i32, %arg2: i32) -> (i32, i32) {
    %c0_i32 = arith.constant 0 : i32
    return %arg0, %arg1 : i32, i32
  }
}

module attributes {stable_mosaic.version = 11 : i64} {
  func.func @_flash_attn_kernel(%arg0: i32, %arg1: i32, %arg2: i32, %arg3: memref<4x8x8xf32, #tpu.memory_space<vmem>>, %arg4: memref<4x8x8xf32, #tpu.memory_space<vmem>>, %arg5: memref<4x8x8xf32, #tpu.memory_space<vmem>>, %arg6: memref<4x8x8xf32, #tpu.memory_space<vmem>>, %arg7: memref<4x8x1xf32, #tpu.memory_space<vmem>>, %arg8: memref<4x8x1xf32, #tpu.memory_space<vmem>>, %arg9: memref<4x8x8xf32, #tpu.memory_space<vmem>>) attributes {dimension_semantics = [#tpu.dimension_semantics<parallel>, #tpu.dimension_semantics<parallel>, #tpu.dimension_semantics<arbitrary>], iteration_bounds = array<i64: 2, 1, 1>, scalar_prefetch = 0 : i64, scratch_operands = 3 : i64, tpu.core_type = #tpu.core_type<tc>, window_params = [{transform_indices = @transform_0, window_bounds = array<i64: 4, 8, 8>}, {transform_indices = @transform_1, window_bounds = array<i64: 4, 8, 8>}, {transform_indices = @transform_2, window_bounds = array<i64: 4, 8, 8>}, {transform_indices = @transform_3, window_bounds = array<i64: 4, 8, 8>}]} {
    %c0_i32 = arith.constant 0 : i32
    %0 = arith.cmpi eq, %arg2, %c0_i32 : i32
    %1 = arith.extui %0 : i1 to i32
    %c0_i32_0 = arith.constant 0 : i32
    %2 = arith.cmpi ne, %1, %c0_i32_0 : i32
    scf.if %2 {
      %cst_32 = arith.constant 0xFF800000 : f32
      %32 = vector.broadcast %cst_32 : f32 to vector<4x8x1xf32>
      %c0_33 = arith.constant 0 : index
      %c0_34 = arith.constant 0 : index
      %c0_35 = arith.constant 0 : index
      %33 = vector.load %arg7[%c0_33, %c0_34, %c0_35] : memref<4x8x1xf32, #tpu.memory_space<vmem>>, vector<4x8x1xf32>
      tpu.vector_store %arg7[%c0_33, %c0_34, %c0_35], %32 {strides = array<i32>} : memref<4x8x1xf32, #tpu.memory_space<vmem>>, vector<4x8x1xf32>,
      %cst_36 = arith.constant 0.000000e+00 : f32
      %34 = vector.broadcast %cst_36 : f32 to vector<4x8x1xf32>
      %c0_37 = arith.constant 0 : index
      %c0_38 = arith.constant 0 : index
      %c0_39 = arith.constant 0 : index
      %35 = vector.load %arg8[%c0_37, %c0_38, %c0_39] : memref<4x8x1xf32, #tpu.memory_space<vmem>>, vector<4x8x1xf32>
      tpu.vector_store %arg8[%c0_37, %c0_38, %c0_39], %34 {strides = array<i32>} : memref<4x8x1xf32, #tpu.memory_space<vmem>>, vector<4x8x1xf32>,
      %cst_40 = arith.constant 0.000000e+00 : f32
      %36 = vector.broadcast %cst_40 : f32 to vector<4x8x8xf32>
      %c0_41 = arith.constant 0 : index
      %c0_42 = arith.constant 0 : index
      %c0_43 = arith.constant 0 : index
      %37 = vector.load %arg9[%c0_41, %c0_42, %c0_43] : memref<4x8x8xf32, #tpu.memory_space<vmem>>, vector<4x8x8xf32>
      tpu.vector_store %arg9[%c0_41, %c0_42, %c0_43], %36 {strides = array<i32>} : memref<4x8x8xf32, #tpu.memory_space<vmem>>, vector<4x8x8xf32>,
    } else {
    }
    %c0 = arith.constant 0 : index
    %c0_1 = arith.constant 0 : index
    %c0_2 = arith.constant 0 : index
    %3 = vector.load %arg3[%c0, %c0_1, %c0_2] : memref<4x8x8xf32, #tpu.memory_space<vmem>>, vector<4x8x8xf32>
    %c0_3 = arith.constant 0 : index
    %c0_4 = arith.constant 0 : index
    %c0_5 = arith.constant 0 : index
    %4 = vector.load %arg4[%c0_3, %c0_4, %c0_5] : memref<4x8x8xf32, #tpu.memory_space<vmem>>, vector<4x8x8xf32>
    "tpu.trace_start"() <{level = 10 : i32, message = "gqd,gkd->gqk"}> : () -> ()
    %cst = arith.constant dense<0.000000e+00> : vector<4x8x8xf32>
    %5 = tpu.matmul %3, %4, %cst {dimension_numbers = #tpu.dot_dimension_numbers<[2], [2], [1], [1], [0, 0, 0, 1, 1, 1], [0], [0]>} : vector<4x8x8xf32>, vector<4x8x8xf32>, vector<4x8x8xf32> -> vector<4x8x8xf32>
    "tpu.trace_stop"() : () -> ()
    %c0_6 = arith.constant 0 : index
    %c0_7 = arith.constant 0 : index
    %c0_8 = arith.constant 0 : index
    %6 = vector.load %arg7[%c0_6, %c0_7, %c0_8] : memref<4x8x1xf32, #tpu.memory_space<vmem>>, vector<4x8x1xf32>
    %cst_9 = arith.constant dense<0xFF800000> : vector<4x8xf32>
    %7 = vector.multi_reduction <maximumf>, %5, %cst_9 [2] : vector<4x8x8xf32> to vector<4x8xf32>
    %8 = vector.shape_cast %7 : vector<4x8xf32> to vector<4x8x1xf32>
    %9 = arith.maximumf %6, %8 : vector<4x8x1xf32>
    %10 = arith.subf %6, %9 : vector<4x8x1xf32>
    %11 = math.exp %10 : vector<4x8x1xf32>
    %12 = vector.broadcast %9 : vector<4x8x1xf32> to vector<4x8x8xf32>
    %13 = arith.subf %5, %12 : vector<4x8x8xf32>
    %14 = math.exp %13 : vector<4x8x8xf32>
    %c0_10 = arith.constant 0 : index
    %c0_11 = arith.constant 0 : index
    %c0_12 = arith.constant 0 : index
    %15 = vector.load %arg8[%c0_10, %c0_11, %c0_12] : memref<4x8x1xf32, #tpu.memory_space<vmem>>, vector<4x8x1xf32>
    %16 = arith.mulf %11, %15 : vector<4x8x1xf32>
    %cst_13 = arith.constant dense<0.000000e+00> : vector<4x8xf32>
    %17 = vector.multi_reduction <add>, %14, %cst_13 [2] : vector<4x8x8xf32> to vector<4x8xf32>
    %18 = vector.shape_cast %17 : vector<4x8xf32> to vector<4x8x1xf32>
    %19 = arith.addf %16, %18 : vector<4x8x1xf32>
    %c0_14 = arith.constant 0 : index
    %c0_15 = arith.constant 0 : index
    %c0_16 = arith.constant 0 : index
    %20 = vector.load %arg8[%c0_14, %c0_15, %c0_16] : memref<4x8x1xf32, #tpu.memory_space<vmem>>, vector<4x8x1xf32>
    tpu.vector_store %arg8[%c0_14, %c0_15, %c0_16], %19 {strides = array<i32>} : memref<4x8x1xf32, #tpu.memory_space<vmem>>, vector<4x8x1xf32>,
    %c0_17 = arith.constant 0 : index
    %c0_18 = arith.constant 0 : index
    %c0_19 = arith.constant 0 : index
    %21 = vector.load %arg9[%c0_17, %c0_18, %c0_19] : memref<4x8x8xf32, #tpu.memory_space<vmem>>, vector<4x8x8xf32>
    %22 = vector.broadcast %11 : vector<4x8x1xf32> to vector<4x8x8xf32>
    %23 = arith.mulf %22, %21 : vector<4x8x8xf32>
    %c0_20 = arith.constant 0 : index
    %c0_21 = arith.constant 0 : index
    %c0_22 = arith.constant 0 : index
    %24 = vector.load %arg5[%c0_20, %c0_21, %c0_22] : memref<4x8x8xf32, #tpu.memory_space<vmem>>, vector<4x8x8xf32>
    "tpu.trace_start"() <{level = 10 : i32, message = "gqk,gkd->gqd"}> : () -> ()
    %cst_23 = arith.constant dense<0.000000e+00> : vector<4x8x8xf32>
    %25 = tpu.matmul %14, %24, %cst_23 {dimension_numbers = #tpu.dot_dimension_numbers<[2], [1], [1], [2], [0, 0, 0, 1, 1, 2], [0], [0]>} : vector<4x8x8xf32>, vector<4x8x8xf32>, vector<4x8x8xf32> -> vector<4x8x8xf32>
    "tpu.trace_stop"() : () -> ()
    %26 = arith.addf %23, %25 : vector<4x8x8xf32>
    %c0_24 = arith.constant 0 : index
    %c0_25 = arith.constant 0 : index
    %c0_26 = arith.constant 0 : index
    %27 = vector.load %arg9[%c0_24, %c0_25, %c0_26] : memref<4x8x8xf32, #tpu.memory_space<vmem>>, vector<4x8x8xf32>
    tpu.vector_store %arg9[%c0_24, %c0_25, %c0_26], %26 {strides = array<i32>} : memref<4x8x8xf32, #tpu.memory_space<vmem>>, vector<4x8x8xf32>,
    %c0_27 = arith.constant 0 : index
    %c0_28 = arith.constant 0 : index
    %c0_29 = arith.constant 0 : index
    %28 = vector.load %arg7[%c0_27, %c0_28, %c0_29] : memref<4x8x1xf32, #tpu.memory_space<vmem>>, vector<4x8x1xf32>
    tpu.vector_store %arg7[%c0_27, %c0_28, %c0_29], %9 {strides = array<i32>} : memref<4x8x1xf32, #tpu.memory_space<vmem>>, vector<4x8x1xf32>,
    %c0_i32_30 = arith.constant 0 : i32
    %29 = arith.cmpi eq, %arg2, %c0_i32_30 : i32
    %30 = arith.extui %29 : i1 to i32
    %c0_i32_31 = arith.constant 0 : i32
    %31 = arith.cmpi ne, %30, %c0_i32_31 : i32
    scf.if %31 {
      %c0_32 = arith.constant 0 : index
      %c0_33 = arith.constant 0 : index
      %c0_34 = arith.constant 0 : index
      %32 = vector.load %arg8[%c0_32, %c0_33, %c0_34] : memref<4x8x1xf32, #tpu.memory_space<vmem>>, vector<4x8x1xf32>
      %33 = tpu.reciprocal %32 {approx = true} : vector<4x8x1xf32> -> vector<4x8x1xf32>
      %c0_35 = arith.constant 0 : index
      %c0_36 = arith.constant 0 : index
      %c0_37 = arith.constant 0 : index
      %34 = vector.load %arg9[%c0_35, %c0_36, %c0_37] : memref<4x8x8xf32, #tpu.memory_space<vmem>>, vector<4x8x8xf32>
      %35 = vector.broadcast %33 : vector<4x8x1xf32> to vector<4x8x8xf32>
      %36 = arith.mulf %34, %35 : vector<4x8x8xf32>
      %c0_38 = arith.constant 0 : index
      %c0_39 = arith.constant 0 : index
      %c0_40 = arith.constant 0 : index
      %37 = vector.load %arg6[%c0_38, %c0_39, %c0_40] : memref<4x8x8xf32, #tpu.memory_space<vmem>>, vector<4x8x8xf32>
      tpu.vector_store %arg6[%c0_38, %c0_39, %c0_40], %36 {strides = array<i32>} : memref<4x8x8xf32, #tpu.memory_space<vmem>>, vector<4x8x8xf32>,
    } else {
    }
    return
  }
  func.func @transform_0(%arg0: i32, %arg1: i32, %arg2: i32) -> (i32, i32, i32) {
    %c0_i32 = arith.constant 0 : i32
    %c0_i32_0 = arith.constant 0 : i32
    return %arg0, %arg1, %c0_i32 : i32, i32, i32
  }
  func.func @transform_1(%arg0: i32, %arg1: i32, %arg2: i32) -> (i32, i32, i32) {
    %c0_i32 = arith.constant 0 : i32
    %c0_i32_0 = arith.constant 0 : i32
    return %arg0, %arg2, %c0_i32 : i32, i32, i32
  }
  func.func @transform_2(%arg0: i32, %arg1: i32, %arg2: i32) -> (i32, i32, i32) {
    %c0_i32 = arith.constant 0 : i32
    %c0_i32_0 = arith.constant 0 : i32
    return %arg0, %arg2, %c0_i32 : i32, i32, i32
  }
  func.func @transform_3(%arg0: i32, %arg1: i32, %arg2: i32) -> (i32, i32, i32) {
    %c0_i32 = arith.constant 0 : i32
    %c0_i32_0 = arith.constant 0 : i32
    return %arg0, %arg1, %c0_i32 : i32, i32, i32
  }
}

module attributes {stable_mosaic.version = 11 : i64} {
  func.func @_linear_kernel(%arg0: i32, %arg1: i32, %arg2: i32, %arg3: memref<16x32xf32, #tpu.memory_space<vmem>>, %arg4: memref<32x32xf32, #tpu.memory_space<vmem>>, %arg5: memref<1x32xf32, #tpu.memory_space<vmem>>, %arg6: memref<16x32xf32, #tpu.memory_space<vmem>>, %arg7: memref<16x32xf32, #tpu.memory_space<vmem>>) attributes {dimension_semantics = [#tpu.dimension_semantics<parallel>, #tpu.dimension_semantics<parallel>, #tpu.dimension_semantics<arbitrary>], iteration_bounds = array<i64: 1, 1, 1>, scalar_prefetch = 0 : i64, scratch_operands = 1 : i64, tpu.core_type = #tpu.core_type<tc>, window_params = [{transform_indices = @transform_0, window_bounds = array<i64: 16, 32>}, {transform_indices = @transform_1, window_bounds = array<i64: 32, 32>}, {transform_indices = @transform_2, window_bounds = array<i64: 1, 32>}, {transform_indices = @transform_3, window_bounds = array<i64: 16, 32>}]} {
    %c0_i32 = arith.constant 0 : i32
    %0 = arith.cmpi eq, %arg2, %c0_i32 : i32
    %1 = arith.extui %0 : i1 to i32
    %c0_i32_0 = arith.constant 0 : i32
    %2 = arith.cmpi ne, %1, %c0_i32_0 : i32
    scf.if %2 {
      %cst_10 = arith.constant 0.000000e+00 : f32
      %12 = vector.broadcast %cst_10 : f32 to vector<16x32xf32>
      %c0_11 = arith.constant 0 : index
      %c0_12 = arith.constant 0 : index
      %13 = vector.load %arg7[%c0_11, %c0_12] : memref<16x32xf32, #tpu.memory_space<vmem>>, vector<16x32xf32>
      tpu.vector_store %arg7[%c0_11, %c0_12], %12 {strides = array<i32>} : memref<16x32xf32, #tpu.memory_space<vmem>>, vector<16x32xf32>,
    } else {
    }
    %c0 = arith.constant 0 : index
    %c0_1 = arith.constant 0 : index
    %3 = vector.load %arg7[%c0, %c0_1] : memref<16x32xf32, #tpu.memory_space<vmem>>, vector<16x32xf32>
    %c0_2 = arith.constant 0 : index
    %c0_3 = arith.constant 0 : index
    %4 = vector.load %arg3[%c0_2, %c0_3] : memref<16x32xf32, #tpu.memory_space<vmem>>, vector<16x32xf32>
    %c0_4 = arith.constant 0 : index
    %c0_5 = arith.constant 0 : index
    %5 = vector.load %arg4[%c0_4, %c0_5] : memref<32x32xf32, #tpu.memory_space<vmem>>, vector<32x32xf32>
    %cst = arith.constant dense<0.000000e+00> : vector<16x32xf32>
    %6 = tpu.matmul %4, %5, %cst {dimension_numbers = #tpu.dot_dimension_numbers<[1], [0], [0], [1], [0, 0, 1, 1], [], []>} : vector<16x32xf32>, vector<32x32xf32>, vector<16x32xf32> -> vector<16x32xf32>
    %7 = arith.addf %3, %6 : vector<16x32xf32>
    %c0_6 = arith.constant 0 : index
    %c0_7 = arith.constant 0 : index
    %8 = vector.load %arg7[%c0_6, %c0_7] : memref<16x32xf32, #tpu.memory_space<vmem>>, vector<16x32xf32>
    tpu.vector_store %arg7[%c0_6, %c0_7], %7 {strides = array<i32>} : memref<16x32xf32, #tpu.memory_space<vmem>>, vector<16x32xf32>,
    %c0_i32_8 = arith.constant 0 : i32
    %9 = arith.cmpi eq, %arg2, %c0_i32_8 : i32
    %10 = arith.extui %9 : i1 to i32
    %c0_i32_9 = arith.constant 0 : i32
    %11 = arith.cmpi ne, %10, %c0_i32_9 : i32
    scf.if %11 {
      %c0_10 = arith.constant 0 : index
      %c0_11 = arith.constant 0 : index
      %12 = vector.load %arg7[%c0_10, %c0_11] : memref<16x32xf32, #tpu.memory_space<vmem>>, vector<16x32xf32>
      %c0_12 = arith.constant 0 : index
      %c0_13 = arith.constant 0 : index
      %13 = vector.load %arg5[%c0_12, %c0_13] : memref<1x32xf32, #tpu.memory_space<vmem>>, vector<1x32xf32>
      %14 = vector.broadcast %13 : vector<1x32xf32> to vector<16x32xf32>
      %15 = arith.addf %12, %14 : vector<16x32xf32>
      %c0_14 = arith.constant 0 : index
      %c0_15 = arith.constant 0 : index
      %16 = vector.load %arg6[%c0_14, %c0_15] : memref<16x32xf32, #tpu.memory_space<vmem>>, vector<16x32xf32>
      tpu.vector_store %arg6[%c0_14, %c0_15], %15 {strides = array<i32>} : memref<16x32xf32, #tpu.memory_space<vmem>>, vector<16x32xf32>,
    } else {
    }
    return
  }
  func.func @transform_0(%arg0: i32, %arg1: i32, %arg2: i32) -> (i32, i32) {
    %c0_i32 = arith.constant 0 : i32
    return %arg0, %arg2 : i32, i32
  }
  func.func @transform_1(%arg0: i32, %arg1: i32, %arg2: i32) -> (i32, i32) {
    %c0_i32 = arith.constant 0 : i32
    return %arg2, %arg1 : i32, i32
  }
  func.func @transform_2(%arg0: i32, %arg1: i32, %arg2: i32) -> (i32, i32) {
    %c0_i32 = arith.constant 0 : i32
    %c0_i32_0 = arith.constant 0 : i32
    return %c0_i32, %arg1 : i32, i32
  }
  func.func @transform_3(%arg0: i32, %arg1: i32, %arg2: i32) -> (i32, i32) {
    %c0_i32 = arith.constant 0 : i32
    return %arg0, %arg1 : i32, i32
  }
}

</mosaic_0001>

<llo_original>
// kernel: self_attention.5
$region0: #{self_attention.5}
  #allocation0 [shape = 'u32[]', space=smem, size = 0x4, offset = 0x4, fixed_abs, tag = 'smem constant byte address 0x4 - core index']
  #allocation1 [shape = 'u32[144,128]{1,0:T(1,128)}', space=vmem, size = 0x12000, scoped, tag = 'internal scratch']
  #allocation2 [shape = 'f32[16,32]{1,0:T(8,128)}', space=vmem, size = 0x2000, scoped, tag = 'scratch operand']
  %s0 = inlined_call_operand.vmem [shape: f32[16,32], index: 0, kind: input, shape index: {}]
  %s1 = inlined_call_operand.vmem [shape: f32[32,32], index: 1, kind: input, shape index: {}]
  %s2 = inlined_call_operand.vmem [shape: f32[1,32], index: 2, kind: input, shape index: {}]
  %s3 = inlined_call_operand.hbm [shape: f32[16,32], index: 3, kind: output, shape index: {}]
  %s4 = sld [smem:[#allocation0]]
  $region30: #{self_attention.5} parent=0
    _
  %s6 = ssub.s32 1, %s4
  %s7 = scalar_select 0, %s6, %s4
  $region1: #{self_attention.5} parent=0
    #allocation3 [shape = 'u8[8192]{0}', space=vmem, size = 0x2000, scoped, tag = 'output window, operand 0, single buffered']
    #allocation4 [shape = 's32[1]{0}', space=sflag, size = 0x4, scoped, tag = 'scoped memory for self_attention.5']
    %8 = vsyncpa [#allocation4], 0
    // Predicated region
    $region2: #{self_attention.5} parent=1 // pred_check
      _
    $region3: #{self_attention.5} parent=1 // pred_check_branch
      %10 = sbr.rel (0) target = $region5
    $region4: #{self_attention.5} parent=1 // pred_region
      _
    $region5: #{self_attention.5} parent=1 // pred_fallthru
      _
    // Predicated region
    $region6: #{self_attention.5} parent=1 // pred_check
      _
    $region7: #{self_attention.5} parent=1 // pred_check_branch
      %12 = sbr.rel (0) target = $region9
    $region8: #{self_attention.5} parent=1 // pred_region
      _
    $region9: #{self_attention.5} parent=1 // pred_fallthru
      _
    // Predicated region
    $region10: #{self_attention.5} parent=1 // pred_check
      _
    $region11: #{self_attention.5} parent=1 // pred_check_branch
      %14 = sbr.rel (0) target = $region13
    $region12: #{self_attention.5} parent=1 // pred_region
      _
    $region13: #{self_attention.5} parent=1 // pred_fallthru
      _
    %p15 = scmp.eq.s32.totalorder 0, 0
    // Predicated region
    $region14: #{self_attention.5} parent=1 // pred_check
      %p16 = pneg %p15
    $region15: #{self_attention.5} parent=1 // pred_check_branch
      %18 = sbr.rel (%p16) target = $region17
    $region16: #{self_attention.5} parent=1 // pred_region
      %vm19 = vcmask 261120
      %20 = vst.msk [vmem:[#allocation2] sm:$0xff] %vm19, 0.0
      %21 = vst.msk [vmem:[#allocation2 + $0x8] sm:$0xff] %vm19, 0.0
    $region17: #{self_attention.5} parent=1 // pred_fallthru
      _
    %v22 = vld [vmem:[#allocation2] sm:$0xff]
    %v23 = vld [vmem:[#allocation2 + $0x8] sm:$0xff]
    %v24 = vld [vmem:[%s0] sm:$0xff]
    %v25 = vld [vmem:[%s0 + $0x8] sm:$0xff]
    %v26 = vld [vmem:[%s1] sm:$0xff]
    %v27 = vld [vmem:[%s1 + $0x8] sm:$0xff]
    %v28 = vld [vmem:[%s1 + $0x10] sm:$0xff]
    %v29 = vld [vmem:[%s1 + $0x18] sm:$0xff]
    %vm30 = vcmask 261120
    %v32 = vsel %vm30, %v24, 0
    %v35 = vsel %vm30, %v25, 0
    %37 = vmatprep.subr.mxu0 0.0
    %38 = vmatpush1.msra.mxu0 %v26
    %39 = vmatprep.subr.mxu0 0.0
    %40 = vmatpush1.msra.mxu0 %v27
    %41 = vmatprep.subr.mxu0 0.0
    %42 = vmatpush1.msra.mxu0 %v28
    %43 = vmatprep.subr.mxu0 0.0
    %44 = vmatpush1.msra.mxu0 %v29
    %45 = vmatprep.subr.mxu0 0.0
    %46 = vmatpush1.msra.mxu0 0.0
    %47 = vmatprep.subr.mxu0 0.0
    %48 = vmatpush1.msra.mxu0 0.0
    %49 = vmatprep.subr.mxu0 0.0
    %50 = vmatpush1.msra.mxu0 0.0
    %51 = vmatprep.subr.mxu0 0.0
    %52 = vmatpush1.msra.mxu0 0.0
    %53 = vmatprep.subr.mxu0 0.0
    %54 = vmatpush1.msra.mxu0 0.0
    %55 = vmatprep.subr.mxu0 0.0
    %56 = vmatpush1.msra.mxu0 0.0
    %57 = vmatprep.subr.mxu0 0.0
    %58 = vmatpush1.msra.mxu0 0.0
    %59 = vmatprep.subr.mxu0 0.0
    %60 = vmatpush1.msra.mxu0 0.0
    %61 = vmatprep.subr.mxu0 0.0
    %62 = vmatpush1.msra.mxu0 0.0
    %63 = vmatprep.subr.mxu0 0.0
    %64 = vmatpush1.msra.mxu0 0.0
    %65 = vmatprep.subr.mxu0 0.0
    %66 = vmatpush1.msra.mxu0 0.0
    %67 = vmatprep.subr.mxu0 0.0
    %68 = vmatpush1.msra.mxu0 0.0
    %69 = vmatprep.subr.mxu0 0.0
    %70 = vmatpush1.msra.mxu0 0.0
    %71 = vmatprep.subr.mxu0 0.0
    %72 = vmatpush1.msra.mxu0 0.0
    %73 = vmatprep.subr.mxu0 0.0
    %74 = vmatpush1.msra.mxu0 0.0
    %75 = vmatprep.subr.mxu0 0.0
    %76 = vmatpush1.msra.mxu0 0.0
    %77 = vmatprep.subr.mxu0 0.0
    %78 = vmatpush1.msra.mxu0 0.0
    %79 = vmatprep.subr.mxu0 0.0
    %80 = vmatpush1.msra.mxu0 0.0
    %81 = vmatprep.subr.mxu0 0.0
    %82 = vmatpush1.msra.mxu0 0.0
    %83 = vmatprep.subr.mxu0 0.0
    %84 = vmatpush1.msra.mxu0 0.0
    %85 = vmatprep.subr.mxu0 0.0
    %86 = vmatpush1.msra.mxu0 0.0
    %87 = vmatprep.subr.mxu0 0.0
    %88 = vmatpush1.msra.mxu0 0.0
    %89 = vmatprep.subr.mxu0 0.0
    %90 = vmatpush1.msra.mxu0 0.0
    %91 = vmatprep.subr.mxu0 0.0
    %92 = vmatpush1.msra.mxu0 0.0
    %93 = vmatprep.subr.mxu0 0.0
    %94 = vmatpush1.msra.mxu0 0.0
    %95 = vmatprep.subr.mxu0 0.0
    %96 = vmatpush1.msra.mxu0 0.0
    %97 = vmatprep.subr.mxu0 0.0
    %98 = vmatpush1.msra.mxu0 0.0
    %99 = vmatprep.subr.mxu0 0.0
    %100 = vmatpush1.msra.mxu0 0.0
    %101 = vmatprep.mubr.f32.mxu0 0.0
    %102 = vmatmul.mubr.f32.gmra.mrb[0].mxu0 %v32
    %v103 = vpop.f32.mrb[0].mxu0
    %v104 = vadd.f32 0.0, %v103
    %v105 = vpop.f32.mrb[0].mxu0
    %106 = vmatprep.mubr.f32.mxu0 0.0
    %107 = vmatmul.mubr.f32.gmra.mrb[0].mxu0 %v35
    %v108 = vpop.f32.mrb[0].mxu0
    %v109 = vadd.f32 0.0, %v108
    %v110 = vpop.f32.mrb[0].mxu0
    %111 = vdwg.mxu0
    %v112 = vadd.f32 %v22, %v104
    %v113 = vadd.f32 %v23, %v109
    %114 = vst.msk [vmem:[#allocation2] sm:$0xff] %vm30, %v112
    %115 = vst.msk [vmem:[#allocation2 + $0x8] sm:$0xff] %vm30, %v113
    // Predicated region
    $region18: #{self_attention.5} parent=1 // pred_check
      %p116 = pneg %p15
    $region19: #{self_attention.5} parent=1 // pred_check_branch
      %118 = sbr.rel (%p116) target = $region21
    $region20: #{self_attention.5} parent=1 // pred_region
      %v119 = vld [vmem:[#allocation2] sm:$0xff]
      %v120 = vld [vmem:[#allocation2 + $0x8] sm:$0xff]
      %v121 = vld [vmem:[%s2] sm:$0x1]
      %v123 = vlaneseq
      %v124 = vshrl.u32 %v123, 7
      %v125 = vsub.s32 0, %v124
      %v126 = vrot.slane %v121, %v125
      %v128 = vadd.f32 %v119, %v126
      %v129 = vadd.f32 %v120, %v126
      %130 = vst.msk [vmem:[#allocation3] sm:$0xff] %vm30, %v128
      %131 = vst.msk [vmem:[#allocation3 + $0x8] sm:$0xff] %vm30, %v129
    $region21: #{self_attention.5} parent=1 // pred_fallthru
      _
    // Predicated region
    $region22: #{self_attention.5} parent=1 // pred_check
      _
    $region23: #{self_attention.5} parent=1 // pred_check_branch
      %133 = sbr.rel (0) target = $region25
    $region24: #{self_attention.5} parent=1 // pred_region
      %s135 = ssub.s32 256, 256
      %136 = vsyncadd [#allocation4], %s135
      %s137 = sshll.u32 [#allocation3], 4
      %s138 = int_to_ptr.vmem [resolvable:$true] %s137
      %143 = dma.vmem_to_hbm [thread:$0]  %s138, 256, %s3, [#allocation4], 128, 128, 8
    $region25: #{self_attention.5} parent=1 // pred_fallthru
      _
    // Predicated region
    $region26: #{self_attention.5} parent=1 // pred_check
      _
    $region27: #{self_attention.5} parent=1 // pred_check_branch
      %145 = sbr.rel (0) target = $region29
    $region28: #{self_attention.5} parent=1 // pred_region
      %146 = dma.done [#allocation4], 256
    $region29: #{self_attention.5} parent=1 // pred_fallthru
      _
    %147 = vsyncpa [#allocation4], 1

// kernel: self_attention.3
$region0: #{self_attention.3}
  #allocation0 [shape = 'u32[]', space=smem, size = 0x4, offset = 0x4, fixed_abs, tag = 'smem constant byte address 0x4 - core index']
  #allocation1 [shape = 'u32[144,128]{1,0:T(1,128)}', space=vmem, size = 0x12000, scoped, tag = 'internal scratch']
  #allocation2 [shape = 'f32[16,96]{1,0:T(8,128)}', space=vmem, size = 0x2000, scoped, tag = 'scratch operand']
  %s0 = inlined_call_operand.vmem [shape: f32[16,32], index: 0, kind: input, shape index: {}]
  %s1 = inlined_call_operand.vmem [shape: f32[32,96], index: 1, kind: input, shape index: {}]
  %s2 = inlined_call_operand.vmem [shape: f32[1,96], index: 2, kind: input, shape index: {}]
  %s3 = inlined_call_operand.vmem [shape: f32[16,96], index: 3, kind: output, shape index: {}]
  %s4 = sld [smem:[#allocation0]]
  $region30: #{self_attention.3} parent=0
    _
  %s6 = ssub.s32 1, %s4
  %s7 = scalar_select 0, %s6, %s4
  // Predicated region
  $region2: #{self_attention.3} parent=0 // pred_check
    _
  $region3: #{self_attention.3} parent=0 // pred_check_branch
    %9 = sbr.rel (0) target = $region5
  $region4: #{self_attention.3} parent=0 // pred_region
    _
  $region5: #{self_attention.3} parent=0 // pred_fallthru
    _
  // Predicated region
  $region6: #{self_attention.3} parent=0 // pred_check
    _
  $region7: #{self_attention.3} parent=0 // pred_check_branch
    %11 = sbr.rel (0) target = $region9
  $region8: #{self_attention.3} parent=0 // pred_region
    _
  $region9: #{self_attention.3} parent=0 // pred_fallthru
    _
  // Predicated region
  $region10: #{self_attention.3} parent=0 // pred_check
    _
  $region11: #{self_attention.3} parent=0 // pred_check_branch
    %13 = sbr.rel (0) target = $region13
  $region12: #{self_attention.3} parent=0 // pred_region
    _
  $region13: #{self_attention.3} parent=0 // pred_fallthru
    _
  %p14 = scmp.eq.s32.totalorder 0, 0
  // Predicated region
  $region14: #{self_attention.3} parent=0 // pred_check
    %p15 = pneg %p14
  $region15: #{self_attention.3} parent=0 // pred_check_branch
    %17 = sbr.rel (%p15) target = $region17
  $region16: #{self_attention.3} parent=0 // pred_region
    %vm18 = vcmask 785408
    %19 = vst.msk [vmem:[#allocation2] sm:$0xff] %vm18, 0.0
    %20 = vst.msk [vmem:[#allocation2 + $0x8] sm:$0xff] %vm18, 0.0
  $region17: #{self_attention.3} parent=0 // pred_fallthru
    _
  %v21 = vld [vmem:[#allocation2] sm:$0xff]
  %v22 = vld [vmem:[#allocation2 + $0x8] sm:$0xff]
  %v23 = vld [vmem:[%s0] sm:$0xff]
  %v24 = vld [vmem:[%s0 + $0x8] sm:$0xff]
  %v25 = vld [vmem:[%s1] sm:$0xff]
  %v26 = vld [vmem:[%s1 + $0x8] sm:$0xff]
  %v27 = vld [vmem:[%s1 + $0x10] sm:$0xff]
  %v28 = vld [vmem:[%s1 + $0x18] sm:$0xff]
  %vm29 = vcmask 261120
  %v31 = vsel %vm29, %v23, 0
  %v34 = vsel %vm29, %v24, 0
  %36 = vmatprep.subr.mxu0 0.0
  %37 = vmatpush1.msra.mxu0 %v25
  %38 = vmatprep.subr.mxu0 0.0
  %39 = vmatpush1.msra.mxu0 %v26
  %40 = vmatprep.subr.mxu0 0.0
  %41 = vmatpush1.msra.mxu0 %v27
  %42 = vmatprep.subr.mxu0 0.0
  %43 = vmatpush1.msra.mxu0 %v28
  %44 = vmatprep.subr.mxu0 0.0
  %45 = vmatpush1.msra.mxu0 0.0
  %46 = vmatprep.subr.mxu0 0.0
  %47 = vmatpush1.msra.mxu0 0.0
  %48 = vmatprep.subr.mxu0 0.0
  %49 = vmatpush1.msra.mxu0 0.0
  %50 = vmatprep.subr.mxu0 0.0
  %51 = vmatpush1.msra.mxu0 0.0
  %52 = vmatprep.subr.mxu0 0.0
  %53 = vmatpush1.msra.mxu0 0.0
  %54 = vmatprep.subr.mxu0 0.0
  %55 = vmatpush1.msra.mxu0 0.0
  %56 = vmatprep.subr.mxu0 0.0
  %57 = vmatpush1.msra.mxu0 0.0
  %58 = vmatprep.subr.mxu0 0.0
  %59 = vmatpush1.msra.mxu0 0.0
  %60 = vmatprep.subr.mxu0 0.0
  %61 = vmatpush1.msra.mxu0 0.0
  %62 = vmatprep.subr.mxu0 0.0
  %63 = vmatpush1.msra.mxu0 0.0
  %64 = vmatprep.subr.mxu0 0.0
  %65 = vmatpush1.msra.mxu0 0.0
  %66 = vmatprep.subr.mxu0 0.0
  %67 = vmatpush1.msra.mxu0 0.0
  %68 = vmatprep.subr.mxu0 0.0
  %69 = vmatpush1.msra.mxu0 0.0
  %70 = vmatprep.subr.mxu0 0.0
  %71 = vmatpush1.msra.mxu0 0.0
  %72 = vmatprep.subr.mxu0 0.0
  %73 = vmatpush1.msra.mxu0 0.0
  %74 = vmatprep.subr.mxu0 0.0
  %75 = vmatpush1.msra.mxu0 0.0
  %76 = vmatprep.subr.mxu0 0.0
  %77 = vmatpush1.msra.mxu0 0.0
  %78 = vmatprep.subr.mxu0 0.0
  %79 = vmatpush1.msra.mxu0 0.0
  %80 = vmatprep.subr.mxu0 0.0
  %81 = vmatpush1.msra.mxu0 0.0
  %82 = vmatprep.subr.mxu0 0.0
  %83 = vmatpush1.msra.mxu0 0.0
  %84 = vmatprep.subr.mxu0 0.0
  %85 = vmatpush1.msra.mxu0 0.0
  %86 = vmatprep.subr.mxu0 0.0
  %87 = vmatpush1.msra.mxu0 0.0
  %88 = vmatprep.subr.mxu0 0.0
  %89 = vmatpush1.msra.mxu0 0.0
  %90 = vmatprep.subr.mxu0 0.0
  %91 = vmatpush1.msra.mxu0 0.0
  %92 = vmatprep.subr.mxu0 0.0
  %93 = vmatpush1.msra.mxu0 0.0
  %94 = vmatprep.subr.mxu0 0.0
  %95 = vmatpush1.msra.mxu0 0.0
  %96 = vmatprep.subr.mxu0 0.0
  %97 = vmatpush1.msra.mxu0 0.0
  %98 = vmatprep.subr.mxu0 0.0
  %99 = vmatpush1.msra.mxu0 0.0
  %100 = vmatprep.mubr.f32.mxu0 0.0
  %101 = vmatmul.mubr.f32.gmra.mrb[0].mxu0 %v31
  %v102 = vpop.f32.mrb[0].mxu0
  %v103 = vadd.f32 0.0, %v102
  %v104 = vpop.f32.mrb[0].mxu0
  %105 = vmatprep.mubr.f32.mxu0 0.0
  %106 = vmatmul.mubr.f32.gmra.mrb[0].mxu0 %v34
  %v107 = vpop.f32.mrb[0].mxu0
  %v108 = vadd.f32 0.0, %v107
  %v109 = vpop.f32.mrb[0].mxu0
  %110 = vdwg.mxu0
  %v111 = vadd.f32 %v21, %v103
  %v112 = vadd.f32 %v22, %v108
  %vm113 = vcmask 785408
  %114 = vst.msk [vmem:[#allocation2] sm:$0xff] %vm113, %v111
  %115 = vst.msk [vmem:[#allocation2 + $0x8] sm:$0xff] %vm113, %v112
  // Predicated region
  $region18: #{self_attention.3} parent=0 // pred_check
    %p116 = pneg %p14
  $region19: #{self_attention.3} parent=0 // pred_check_branch
    %118 = sbr.rel (%p116) target = $region21
  $region20: #{self_attention.3} parent=0 // pred_region
    %v119 = vld [vmem:[#allocation2] sm:$0xff]
    %v120 = vld [vmem:[#allocation2 + $0x8] sm:$0xff]
    %v121 = vld [vmem:[%s2] sm:$0x1]
    %v123 = vlaneseq
    %v124 = vshrl.u32 %v123, 7
    %v125 = vsub.s32 0, %v124
    %v126 = vrot.slane %v121, %v125
    %v128 = vadd.f32 %v119, %v126
    %v129 = vadd.f32 %v120, %v126
    %130 = vst.msk [vmem:[%s3] sm:$0xff] %vm113, %v128
    %131 = vst.msk [vmem:[%s3 + $0x8] sm:$0xff] %vm113, %v129
  $region21: #{self_attention.3} parent=0 // pred_fallthru
    _
  // Predicated region
  $region22: #{self_attention.3} parent=0 // pred_check
    _
  $region23: #{self_attention.3} parent=0 // pred_check_branch
    %133 = sbr.rel (0) target = $region25
  $region24: #{self_attention.3} parent=0 // pred_region
    _
  $region25: #{self_attention.3} parent=0 // pred_fallthru
    _
  // Predicated region
  $region26: #{self_attention.3} parent=0 // pred_check
    _
  $region27: #{self_attention.3} parent=0 // pred_check_branch
    %135 = sbr.rel (0) target = $region29
  $region28: #{self_attention.3} parent=0 // pred_region
    _
  $region29: #{self_attention.3} parent=0 // pred_fallthru
    _

// kernel: self_attention.4
$region0: #{self_attention.4}
  #allocation0 [shape = 'u32[]', space=smem, size = 0x4, offset = 0x4, fixed_abs, tag = 'smem constant byte address 0x4 - core index']
  #allocation1 [shape = 'u32[144,128]{1,0:T(1,128)}', space=vmem, size = 0x12000, scoped, tag = 'internal scratch']
  #allocation2 [shape = 'f32[4,8,1]{2,1,0:T(8,128)}', space=vmem, size = 0x4000, scoped, tag = 'scratch operand']
  #allocation3 [shape = 'f32[4,8,1]{2,1,0:T(8,128)}', space=vmem, size = 0x4000, scoped, tag = 'scratch operand']
  #allocation4 [shape = 'f32[4,8,8]{2,1,0:T(8,128)}', space=vmem, size = 0x4000, scoped, tag = 'scratch operand']
  %s0 = inlined_call_operand.vmem [shape: f32[8,8,8], index: 0, kind: input, shape index: {}]
  %s1 = inlined_call_operand.vmem [shape: f32[8,8,8], index: 1, kind: input, shape index: {}]
  %s2 = inlined_call_operand.vmem [shape: f32[8,8,8], index: 2, kind: input, shape index: {}]
  %s3 = inlined_call_operand.vmem [shape: f32[8,8,8], index: 3, kind: output, shape index: {}]
  %s4 = sld [smem:[#allocation0]]
  $region53: #{self_attention.4} parent=0
    _
  %s6 = ssub.s32 1, %s4
  %s7 = scalar_select 0, %s6, %s4
  loop: start=0, step=1, limit=4
  $region2: #{self_attention.4} parent=0 // loop_pre_header
    _
  $region3: #{self_attention.4} parent=0 // loop_header
    %s9 = sphi 0, %s13
    %p10 = scmp.ge.s32.totalorder %s9, 4
    %s16 = sphi 0, %s35
    %s17 = sphi 0, %s31
    %s18 = sphi 0, %s27
    %s19 = sphi 0, %s16
    %s20 = sphi 0, %s17
    %s21 = sphi 0, %s18
    %s22 = sphi 0, %s19
    %s23 = sphi 0, %s20
    %s24 = sphi 0, %s21
    %s40 = sphi 0, %s42
    %s43 = sphi 0, %s40
    %s44 = sphi 0, %s43
    %s60 = sphi 0, %s44
    %s68 = sphi 0, %s70
    %s71 = sphi 0, %s68
    %s72 = sphi 0, %s71
    %s88 = sphi 0, %s72
    %s96 = sphi 0, %s98
    %s99 = sphi 0, %s96
    %s100 = sphi 0, %s99
    %s116 = sphi 0, %s100
    %s124 = sphi 0, %s126
    %s127 = sphi 0, %s124
    %s128 = sphi 0, %s127
    %s144 = sphi 0, %s128
  $region4: #{self_attention.4} parent=0 // loop_header_branch
    %12 = sbr.rel (%p10) target = $region8
  $region5: #{self_attention.4} parent=0 // loop_body
    %s14 = ssub.s32 %s9, 1
    %s15 = ssub.s32 %s9, 2
    %s25 = sadd.s32 1, %s18
    %p26 = scmp.ge.s32.totalorder %s25, 1
    %s27 = scalar_select %p26, 0, %s25
    %s28 = sadd.s32 1, %s17
    %s29 = scalar_select %p26, %s28, %s17
    %p30 = scmp.ge.s32.totalorder %s29, 1
    %s31 = scalar_select %p30, 0, %s29
    %s32 = sadd.s32 1, %s16
    %s33 = scalar_select %p30, %s32, %s16
    %p34 = scmp.ge.s32.totalorder %s33, 2
    %s35 = scalar_select %p34, 0, %s33
    %s36 = ssub.s32 %s16, %s35
    %s37 = ssub.s32 %s17, %s31
    %s38 = sor.u32 %s36, %s37
    %p39 = scmp.eq.s32.totalorder %s38, 0
    %s41 = sadd.s32 %s40, 1
    %s42 = scalar_select %p39, %s40, %s41
    %p45 = pneg %p39
    %p46 = scmp.eq.s32.totalorder %s9, 1
    %p47 = por %p45, %p46
    %p48 = scmp.ne.s32.totalorder %s40, %s43
    %p49 = scmp.eq.s32.totalorder %s9, 0
    %p50 = por %p48, %p49
    %p51 = scmp.ne.s32.totalorder %s40, %s43
    %p52 = scmp.eq.s32.totalorder %s14, 1
    %p53 = por %p51, %p52
    %p54 = scmp.ne.s32.totalorder %s43, %s44
    %p55 = scmp.eq.s32.totalorder %s14, 0
    %p56 = por %p54, %p55
    %p57 = scmp.ne.s32.totalorder %s43, %s44
    %p58 = scmp.eq.s32.totalorder %s15, 1
    %p59 = por %p57, %p58
    %p61 = scmp.ne.s32.totalorder %s44, %s60
    %p62 = scmp.eq.s32.totalorder %s15, 0
    %p63 = por %p61, %p62
    %s64 = ssub.s32 %s16, %s35
    %s65 = ssub.s32 %s18, %s27
    %s66 = sor.u32 %s64, %s65
    %p67 = scmp.eq.s32.totalorder %s66, 0
    %s69 = sadd.s32 %s68, 1
    %s70 = scalar_select %p67, %s68, %s69
    %p73 = pneg %p67
    %p74 = scmp.eq.s32.totalorder %s9, 1
    %p75 = por %p73, %p74
    %p76 = scmp.ne.s32.totalorder %s68, %s71
    %p77 = scmp.eq.s32.totalorder %s9, 0
    %p78 = por %p76, %p77
    %p79 = scmp.ne.s32.totalorder %s68, %s71
    %p80 = scmp.eq.s32.totalorder %s14, 1
    %p81 = por %p79, %p80
    %p82 = scmp.ne.s32.totalorder %s71, %s72
    %p83 = scmp.eq.s32.totalorder %s14, 0
    %p84 = por %p82, %p83
    %p85 = scmp.ne.s32.totalorder %s71, %s72
    %p86 = scmp.eq.s32.totalorder %s15, 1
    %p87 = por %p85, %p86
    %p89 = scmp.ne.s32.totalorder %s72, %s88
    %p90 = scmp.eq.s32.totalorder %s15, 0
    %p91 = por %p89, %p90
    %s92 = ssub.s32 %s16, %s35
    %s93 = ssub.s32 %s18, %s27
    %s94 = sor.u32 %s92, %s93
    %p95 = scmp.eq.s32.totalorder %s94, 0
    %s97 = sadd.s32 %s96, 1
    %s98 = scalar_select %p95, %s96, %s97
    %p101 = pneg %p95
    %p102 = scmp.eq.s32.totalorder %s9, 1
    %p103 = por %p101, %p102
    %p104 = scmp.ne.s32.totalorder %s96, %s99
    %p105 = scmp.eq.s32.totalorder %s9, 0
    %p106 = por %p104, %p105
    %p107 = scmp.ne.s32.totalorder %s96, %s99
    %p108 = scmp.eq.s32.totalorder %s14, 1
    %p109 = por %p107, %p108
    %p110 = scmp.ne.s32.totalorder %s99, %s100
    %p111 = scmp.eq.s32.totalorder %s14, 0
    %p112 = por %p110, %p111
    %p113 = scmp.ne.s32.totalorder %s99, %s100
    %p114 = scmp.eq.s32.totalorder %s15, 1
    %p115 = por %p113, %p114
    %p117 = scmp.ne.s32.totalorder %s100, %s116
    %p118 = scmp.eq.s32.totalorder %s15, 0
    %p119 = por %p117, %p118
    %s120 = ssub.s32 %s16, %s35
    %s121 = ssub.s32 %s17, %s31
    %s122 = sor.u32 %s120, %s121
    %p123 = scmp.eq.s32.totalorder %s122, 0
    %s125 = sadd.s32 %s124, 1
    %s126 = scalar_select %p123, %s124, %s125
    %p129 = pneg %p123
    %p130 = scmp.eq.s32.totalorder %s9, 1
    %p131 = por %p129, %p130
    %p132 = scmp.ne.s32.totalorder %s124, %s127
    %p133 = scmp.eq.s32.totalorder %s9, 0
    %p134 = por %p132, %p133
    %p135 = scmp.ne.s32.totalorder %s124, %s127
    %p136 = scmp.eq.s32.totalorder %s14, 1
    %p137 = por %p135, %p136
    %p138 = scmp.ne.s32.totalorder %s127, %s128
    %p139 = scmp.eq.s32.totalorder %s14, 0
    %p140 = por %p138, %p139
    %p141 = scmp.ne.s32.totalorder %s127, %s128
    %p142 = scmp.eq.s32.totalorder %s15, 1
    %p143 = por %p141, %p142
    %p145 = scmp.ne.s32.totalorder %s128, %s144
    %p146 = scmp.eq.s32.totalorder %s15, 0
    %p147 = por %p145, %p146
    %p148 = scmp.le.s32.totalorder 1, %s9
    %p149 = scmp.lt.s32.totalorder %s9, 3
    %p150 = pnand %p148, %p149
    %p151 = pneg %p150
    // Predicated region
    $region9: #{self_attention.4} parent=5 // pred_check
      _
    $region10: #{self_attention.4} parent=5 // pred_check_branch
      %153 = sbr.rel (%p150) target = $region12
    $region11: #{self_attention.4} parent=5 // pred_region
      %s154 = ssub.s32 %s9, 1
    $region12: #{self_attention.4} parent=5 // pred_fallthru
      _
    %p155 = scmp.lt.s32.totalorder %s9, 2
    // Predicated region
    $region13: #{self_attention.4} parent=5 // pred_check
      %p156 = pneg %p155
    $region14: #{self_attention.4} parent=5 // pred_check_branch
      %158 = sbr.rel (%p156) target = $region16
    $region15: #{self_attention.4} parent=5 // pred_region
      // Predicated region
      $region17: #{self_attention.4} parent=15 // pred_check
        %p159 = pneg %p50
      $region18: #{self_attention.4} parent=15 // pred_check_branch
        %161 = sbr.rel (%p159) target = $region20
      $region19: #{self_attention.4} parent=15 // pred_region
        %s162 = smul.u32 4, %s16
        %p163 = scmp.lt.s32.totalorder %s162, 7
        %s164 = scalar_select %p163, %s162, 7
        %p165 = scmp.lt.s32.totalorder %s17, 0
        %s166 = scalar_select %p165, %s17, 0
        %s167 = sadd.s32 %s166, %s164
        %s168 = smul.addr %s167, 8
        %s169 = scalar_lea.vmem %s0, %s168
        %s170 = smul.u32 4, %s16
      $region20: #{self_attention.4} parent=15 // pred_fallthru
        _
      // Predicated region
      $region21: #{self_attention.4} parent=15 // pred_check
        %p171 = pneg %p78
      $region22: #{self_attention.4} parent=15 // pred_check_branch
        %173 = sbr.rel (%p171) target = $region24
      $region23: #{self_attention.4} parent=15 // pred_region
        %s174 = smul.u32 4, %s16
        %p175 = scmp.lt.s32.totalorder %s174, 7
        %s176 = scalar_select %p175, %s174, 7
        %p177 = scmp.lt.s32.totalorder %s18, 0
        %s178 = scalar_select %p177, %s18, 0
        %s179 = sadd.s32 %s178, %s176
        %s180 = smul.addr %s179, 8
        %s181 = scalar_lea.vmem %s1, %s180
        %s182 = smul.u32 4, %s16
      $region24: #{self_attention.4} parent=15 // pred_fallthru
        _
      // Predicated region
      $region25: #{self_attention.4} parent=15 // pred_check
        %p183 = pneg %p106
      $region26: #{self_attention.4} parent=15 // pred_check_branch
        %185 = sbr.rel (%p183) target = $region28
      $region27: #{self_attention.4} parent=15 // pred_region
        %s186 = smul.u32 4, %s16
        %p187 = scmp.lt.s32.totalorder %s186, 7
        %s188 = scalar_select %p187, %s186, 7
        %p189 = scmp.lt.s32.totalorder %s18, 0
        %s190 = scalar_select %p189, %s18, 0
        %s191 = sadd.s32 %s190, %s188
        %s192 = smul.addr %s191, 8
        %s193 = scalar_lea.vmem %s2, %s192
        %s194 = smul.u32 4, %s16
      $region28: #{self_attention.4} parent=15 // pred_fallthru
        _
    $region16: #{self_attention.4} parent=5 // pred_fallthru
      _
    %p195 = scmp.le.s32.totalorder 1, %s9
    %p196 = scmp.lt.s32.totalorder %s9, 3
    %p197 = pnand %p195, %p196
    %p198 = pneg %p197
    // Predicated region
    $region29: #{self_attention.4} parent=5 // pred_check
      _
    $region30: #{self_attention.4} parent=5 // pred_check_branch
      %200 = sbr.rel (%p197) target = $region32
    $region31: #{self_attention.4} parent=5 // pred_region
      %s201 = ssub.s32 %s9, 1
      %s202 = smul.u32 4, %s19
      %p203 = scmp.lt.s32.totalorder %s202, 7
      %s204 = scalar_select %p203, %s202, 7
      %p205 = scmp.lt.s32.totalorder %s20, 0
      %s206 = scalar_select %p205, %s20, 0
      %s207 = sadd.s32 %s206, %s204
      %s208 = smul.addr %s207, 8
      %s209 = scalar_lea.vmem %s0, %s208
      %p210 = pneg %p56
      %p211 = pneg %p53
      %s212 = smul.u32 4, %s19
      %p213 = scmp.lt.s32.totalorder %s212, 7
      %s214 = scalar_select %p213, %s212, 7
      %p215 = scmp.lt.s32.totalorder %s21, 0
      %s216 = scalar_select %p215, %s21, 0
      %s217 = sadd.s32 %s216, %s214
      %s218 = smul.addr %s217, 8
      %s219 = scalar_lea.vmem %s1, %s218
      %p220 = pneg %p84
      %p221 = pneg %p81
      %s222 = smul.u32 4, %s19
      %p223 = scmp.lt.s32.totalorder %s222, 7
      %s224 = scalar_select %p223, %s222, 7
      %p225 = scmp.lt.s32.totalorder %s21, 0
      %s226 = scalar_select %p225, %s21, 0
      %s227 = sadd.s32 %s226, %s224
      %s228 = smul.addr %s227, 8
      %s229 = scalar_lea.vmem %s2, %s228
      %p230 = pneg %p112
      %p231 = pneg %p109
      %p232 = pneg %p140
      %p233 = pneg %p137
      %s234 = smul.u32 4, %s19
      %p235 = scmp.lt.s32.totalorder %s234, 7
      %s236 = scalar_select %p235, %s234, 7
      %p237 = scmp.lt.s32.totalorder %s20, 0
      %s238 = scalar_select %p237, %s20, 0
      %s239 = sadd.s32 %s238, %s236
      %s240 = smul.addr %s239, 8
      %s241 = scalar_lea.vmem %s3, %s240
      %s242 = smul.u32 4, %s19
      %p243 = scmp.lt.s32.totalorder %s242, 7
      %s244 = scalar_select %p243, %s242, 7
      %p245 = scmp.lt.s32.totalorder %s20, 0
      %s246 = scalar_select %p245, %s20, 0
      %s247 = sadd.s32 %s246, %s244
      %s248 = smul.addr %s247, 8
      %s249 = scalar_lea.vmem %s0, %s248
      %s250 = smul.u32 4, %s19
      %s251 = smul.u32 4, %s19
      %p252 = scmp.lt.s32.totalorder %s251, 7
      %s253 = scalar_select %p252, %s251, 7
      %p254 = scmp.lt.s32.totalorder %s21, 0
      %s255 = scalar_select %p254, %s21, 0
      %s256 = sadd.s32 %s255, %s253
      %s257 = smul.addr %s256, 8
      %s258 = scalar_lea.vmem %s1, %s257
      %s259 = smul.u32 4, %s19
      %s260 = smul.u32 4, %s19
      %p261 = scmp.lt.s32.totalorder %s260, 7
      %s262 = scalar_select %p261, %s260, 7
      %p263 = scmp.lt.s32.totalorder %s21, 0
      %s264 = scalar_select %p263, %s21, 0
      %s265 = sadd.s32 %s264, %s262
      %s266 = smul.addr %s265, 8
      %s267 = scalar_lea.vmem %s2, %s266
      %s268 = smul.u32 4, %s19
      %s269 = smul.u32 4, %s19
      %p270 = scmp.lt.s32.totalorder %s269, 7
      %s271 = scalar_select %p270, %s269, 7
      %p272 = scmp.lt.s32.totalorder %s20, 0
      %s273 = scalar_select %p272, %s20, 0
      %s274 = sadd.s32 %s273, %s271
      %s275 = smul.addr %s274, 8
      %s276 = scalar_lea.vmem %s3, %s275
      %s277 = smul.u32 4, %s19
      %p278 = scmp.eq.s32.totalorder %s21, 0
      // Predicated region
      $region33: #{self_attention.4} parent=31 // pred_check
        %p279 = pneg %p278
      $region34: #{self_attention.4} parent=31 // pred_check_branch
        %281 = sbr.rel (%p279) target = $region36
      $region35: #{self_attention.4} parent=31 // pred_region
        %vm282 = vcmask 7168
        %283 = vst.msk [vmem:[#allocation2] sm:$0xff] %vm282, -inf
        %284 = vst.msk [vmem:[#allocation2 + $0x8] sm:$0xff] %vm282, -inf
        %285 = vst.msk [vmem:[#allocation2 + $0x10] sm:$0xff] %vm282, -inf
        %286 = vst.msk [vmem:[#allocation2 + $0x18] sm:$0xff] %vm282, -inf
        %287 = vst.msk [vmem:[#allocation3] sm:$0xff] %vm282, 0.0
        %288 = vst.msk [vmem:[#allocation3 + $0x8] sm:$0xff] %vm282, 0.0
        %289 = vst.msk [vmem:[#allocation3 + $0x10] sm:$0xff] %vm282, 0.0
        %290 = vst.msk [vmem:[#allocation3 + $0x18] sm:$0xff] %vm282, 0.0
        %vm291 = vcmask 64512
        %292 = vst.msk [vmem:[#allocation4] sm:$0xff] %vm291, 0.0
        %293 = vst.msk [vmem:[#allocation4 + $0x8] sm:$0xff] %vm291, 0.0
        %294 = vst.msk [vmem:[#allocation4 + $0x10] sm:$0xff] %vm291, 0.0
        %295 = vst.msk [vmem:[#allocation4 + $0x18] sm:$0xff] %vm291, 0.0
      $region36: #{self_attention.4} parent=31 // pred_fallthru
        _
      %v296 = vld [vmem:[%s249] sm:$0xff]
      %v297 = vld [vmem:[%s249 + $0x8] sm:$0xff]
      %v298 = vld [vmem:[%s249 + $0x10] sm:$0xff]
      %v299 = vld [vmem:[%s249 + $0x18] sm:$0xff]
      %v300 = vld [vmem:[%s258] sm:$0xff]
      %v301 = vld [vmem:[%s258 + $0x8] sm:$0xff]
      %v302 = vld [vmem:[%s258 + $0x10] sm:$0xff]
      %v303 = vld [vmem:[%s258 + $0x18] sm:$0xff]
      %vm304 = vcmask 64512
      %v306 = vsel %vm304, %v296, 0
      %v309 = vsel %vm304, %v300, 0
      %311 = vmatprep.subr.mxu0 0.0
      %312 = vmatpush1.xpose.msra.mxu0 %v309
      %313 = vmatprep.subr.mxu0 0.0
      %314 = vmatpush1.xpose.msra.mxu0 0.0
      %315 = vmatprep.subr.mxu0 0.0
      %316 = vmatpush1.xpose.msra.mxu0 0.0
      %317 = vmatprep.subr.mxu0 0.0
      %318 = vmatpush1.xpose.msra.mxu0 0.0
      %319 = vmatprep.subr.mxu0 0.0
      %320 = vmatpush1.xpose.msra.mxu0 0.0
      %321 = vmatprep.subr.mxu0 0.0
      %322 = vmatpush1.xpose.msra.mxu0 0.0
      %323 = vmatprep.subr.mxu0 0.0
      %324 = vmatpush1.xpose.msra.mxu0 0.0
      %325 = vmatprep.subr.mxu0 0.0
      %326 = vmatpush1.xpose.msra.mxu0 0.0
      %327 = vmatprep.subr.mxu0 0.0
      %328 = vmatpush1.xpose.msra.mxu0 0.0
      %329 = vmatprep.subr.mxu0 0.0
      %330 = vmatpush1.xpose.msra.mxu0 0.0
      %331 = vmatprep.subr.mxu0 0.0
      %332 = vmatpush1.xpose.msra.mxu0 0.0
      %333 = vmatprep.subr.mxu0 0.0
      %334 = vmatpush1.xpose.msra.mxu0 0.0
      %335 = vmatprep.subr.mxu0 0.0
      %336 = vmatpush1.xpose.msra.mxu0 0.0
      %337 = vmatprep.subr.mxu0 0.0
      %338 = vmatpush1.xpose.msra.mxu0 0.0
      %339 = vmatprep.subr.mxu0 0.0
      %340 = vmatpush1.xpose.msra.mxu0 0.0
      %341 = vmatprep.subr.mxu0 0.0
      %342 = vmatpush1.xpose.msra.mxu0 0.0
      %343 = vmatprep.subr.mxu0 0.0
      %344 = vmatpush1.xpose.msra.mxu0 0.0
      %345 = vmatprep.subr.mxu0 0.0
      %346 = vmatpush1.xpose.msra.mxu0 0.0
      %347 = vmatprep.subr.mxu0 0.0
      %348 = vmatpush1.xpose.msra.mxu0 0.0
      %349 = vmatprep.subr.mxu0 0.0
      %350 = vmatpush1.xpose.msra.mxu0 0.0
      %351 = vmatprep.subr.mxu0 0.0
      %352 = vmatpush1.xpose.msra.mxu0 0.0
      %353 = vmatprep.subr.mxu0 0.0
      %354 = vmatpush1.xpose.msra.mxu0 0.0
      %355 = vmatprep.subr.mxu0 0.0
      %356 = vmatpush1.xpose.msra.mxu0 0.0
      %357 = vmatprep.subr.mxu0 0.0
      %358 = vmatpush1.xpose.msra.mxu0 0.0
      %359 = vmatprep.subr.mxu0 0.0
      %360 = vmatpush1.xpose.msra.mxu0 0.0
      %361 = vmatprep.subr.mxu0 0.0
      %362 = vmatpush1.xpose.msra.mxu0 0.0
      %363 = vmatprep.subr.mxu0 0.0
      %364 = vmatpush1.xpose.msra.mxu0 0.0
      %365 = vmatprep.subr.mxu0 0.0
      %366 = vmatpush1.xpose.msra.mxu0 0.0
      %367 = vmatprep.subr.mxu0 0.0
      %368 = vmatpush1.xpose.msra.mxu0 0.0
      %369 = vmatprep.subr.mxu0 0.0
      %370 = vmatpush1.xpose.msra.mxu0 0.0
      %371 = vmatprep.subr.mxu0 0.0
      %372 = vmatpush1.xpose.msra.mxu0 0.0
      %373 = vmatprep.subr.mxu0 0.0
      %374 = vmatpush1.xpose.msra.mxu0 0.0
      %375 = vmatprep.mubr.f32.mxu0 0.0
      %376 = vmatmul.mubr.f32.gmra.mrb[0].mxu0 %v306
      %v377 = vpop.f32.mrb[0].mxu0
      %v378 = vadd.f32 0.0, %v377
      %v379 = vpop.f32.mrb[0].mxu0
      %380 = vdwg.mxu0
      %v382 = vsel %vm304, %v297, 0
      %v385 = vsel %vm304, %v301, 0
      %387 = vmatprep.subr.mxu0 0.0
      %388 = vmatpush1.xpose.msra.mxu0 %v385
      %389 = vmatprep.subr.mxu0 0.0
      %390 = vmatpush1.xpose.msra.mxu0 0.0
      %391 = vmatprep.subr.mxu0 0.0
      %392 = vmatpush1.xpose.msra.mxu0 0.0
      %393 = vmatprep.subr.mxu0 0.0
      %394 = vmatpush1.xpose.msra.mxu0 0.0
      %395 = vmatprep.subr.mxu0 0.0
      %396 = vmatpush1.xpose.msra.mxu0 0.0
      %397 = vmatprep.subr.mxu0 0.0
      %398 = vmatpush1.xpose.msra.mxu0 0.0
      %399 = vmatprep.subr.mxu0 0.0
      %400 = vmatpush1.xpose.msra.mxu0 0.0
      %401 = vmatprep.subr.mxu0 0.0
      %402 = vmatpush1.xpose.msra.mxu0 0.0
      %403 = vmatprep.subr.mxu0 0.0
      %404 = vmatpush1.xpose.msra.mxu0 0.0
      %405 = vmatprep.subr.mxu0 0.0
      %406 = vmatpush1.xpose.msra.mxu0 0.0
      %407 = vmatprep.subr.mxu0 0.0
      %408 = vmatpush1.xpose.msra.mxu0 0.0
      %409 = vmatprep.subr.mxu0 0.0
      %410 = vmatpush1.xpose.msra.mxu0 0.0
      %411 = vmatprep.subr.mxu0 0.0
      %412 = vmatpush1.xpose.msra.mxu0 0.0
      %413 = vmatprep.subr.mxu0 0.0
      %414 = vmatpush1.xpose.msra.mxu0 0.0
      %415 = vmatprep.subr.mxu0 0.0
      %416 = vmatpush1.xpose.msra.mxu0 0.0
      %417 = vmatprep.subr.mxu0 0.0
      %418 = vmatpush1.xpose.msra.mxu0 0.0
      %419 = vmatprep.subr.mxu0 0.0
      %420 = vmatpush1.xpose.msra.mxu0 0.0
      %421 = vmatprep.subr.mxu0 0.0
      %422 = vmatpush1.xpose.msra.mxu0 0.0
      %423 = vmatprep.subr.mxu0 0.0
      %424 = vmatpush1.xpose.msra.mxu0 0.0
      %425 = vmatprep.subr.mxu0 0.0
      %426 = vmatpush1.xpose.msra.mxu0 0.0
      %427 = vmatprep.subr.mxu0 0.0
      %428 = vmatpush1.xpose.msra.mxu0 0.0
      %429 = vmatprep.subr.mxu0 0.0
      %430 = vmatpush1.xpose.msra.mxu0 0.0
      %431 = vmatprep.subr.mxu0 0.0
      %432 = vmatpush1.xpose.msra.mxu0 0.0
      %433 = vmatprep.subr.mxu0 0.0
      %434 = vmatpush1.xpose.msra.mxu0 0.0
      %435 = vmatprep.subr.mxu0 0.0
      %436 = vmatpush1.xpose.msra.mxu0 0.0
      %437 = vmatprep.subr.mxu0 0.0
      %438 = vmatpush1.xpose.msra.mxu0 0.0
      %439 = vmatprep.subr.mxu0 0.0
      %440 = vmatpush1.xpose.msra.mxu0 0.0
      %441 = vmatprep.subr.mxu0 0.0
      %442 = vmatpush1.xpose.msra.mxu0 0.0
      %443 = vmatprep.subr.mxu0 0.0
      %444 = vmatpush1.xpose.msra.mxu0 0.0
      %445 = vmatprep.subr.mxu0 0.0
      %446 = vmatpush1.xpose.msra.mxu0 0.0
      %447 = vmatprep.subr.mxu0 0.0
      %448 = vmatpush1.xpose.msra.mxu0 0.0
      %449 = vmatprep.subr.mxu0 0.0
      %450 = vmatpush1.xpose.msra.mxu0 0.0
      %451 = vmatprep.mubr.f32.mxu0 0.0
      %452 = vmatmul.mubr.f32.gmra.mrb[0].mxu0 %v382
      %v453 = vpop.f32.mrb[0].mxu0
      %v454 = vadd.f32 0.0, %v453
      %v455 = vpop.f32.mrb[0].mxu0
      %456 = vdwg.mxu0
      %v458 = vsel %vm304, %v298, 0
      %v461 = vsel %vm304, %v302, 0
      %463 = vmatprep.subr.mxu0 0.0
      %464 = vmatpush1.xpose.msra.mxu0 %v461
      %465 = vmatprep.subr.mxu0 0.0
      %466 = vmatpush1.xpose.msra.mxu0 0.0
      %467 = vmatprep.subr.mxu0 0.0
      %468 = vmatpush1.xpose.msra.mxu0 0.0
      %469 = vmatprep.subr.mxu0 0.0
      %470 = vmatpush1.xpose.msra.mxu0 0.0
      %471 = vmatprep.subr.mxu0 0.0
      %472 = vmatpush1.xpose.msra.mxu0 0.0
      %473 = vmatprep.subr.mxu0 0.0
      %474 = vmatpush1.xpose.msra.mxu0 0.0
      %475 = vmatprep.subr.mxu0 0.0
      %476 = vmatpush1.xpose.msra.mxu0 0.0
      %477 = vmatprep.subr.mxu0 0.0
      %478 = vmatpush1.xpose.msra.mxu0 0.0
      %479 = vmatprep.subr.mxu0 0.0
      %480 = vmatpush1.xpose.msra.mxu0 0.0
      %481 = vmatprep.subr.mxu0 0.0
      %482 = vmatpush1.xpose.msra.mxu0 0.0
      %483 = vmatprep.subr.mxu0 0.0
      %484 = vmatpush1.xpose.msra.mxu0 0.0
      %485 = vmatprep.subr.mxu0 0.0
      %486 = vmatpush1.xpose.msra.mxu0 0.0
      %487 = vmatprep.subr.mxu0 0.0
      %488 = vmatpush1.xpose.msra.mxu0 0.0
      %489 = vmatprep.subr.mxu0 0.0
      %490 = vmatpush1.xpose.msra.mxu0 0.0
      %491 = vmatprep.subr.mxu0 0.0
      %492 = vmatpush1.xpose.msra.mxu0 0.0
      %493 = vmatprep.subr.mxu0 0.0
      %494 = vmatpush1.xpose.msra.mxu0 0.0
      %495 = vmatprep.subr.mxu0 0.0
      %496 = vmatpush1.xpose.msra.mxu0 0.0
      %497 = vmatprep.subr.mxu0 0.0
      %498 = vmatpush1.xpose.msra.mxu0 0.0
      %499 = vmatprep.subr.mxu0 0.0
      %500 = vmatpush1.xpose.msra.mxu0 0.0
      %501 = vmatprep.subr.mxu0 0.0
      %502 = vmatpush1.xpose.msra.mxu0 0.0
      %503 = vmatprep.subr.mxu0 0.0
      %504 = vmatpush1.xpose.msra.mxu0 0.0
      %505 = vmatprep.subr.mxu0 0.0
      %506 = vmatpush1.xpose.msra.mxu0 0.0
      %507 = vmatprep.subr.mxu0 0.0
      %508 = vmatpush1.xpose.msra.mxu0 0.0
      %509 = vmatprep.subr.mxu0 0.0
      %510 = vmatpush1.xpose.msra.mxu0 0.0
      %511 = vmatprep.subr.mxu0 0.0
      %512 = vmatpush1.xpose.msra.mxu0 0.0
      %513 = vmatprep.subr.mxu0 0.0
      %514 = vmatpush1.xpose.msra.mxu0 0.0
      %515 = vmatprep.subr.mxu0 0.0
      %516 = vmatpush1.xpose.msra.mxu0 0.0
      %517 = vmatprep.subr.mxu0 0.0
      %518 = vmatpush1.xpose.msra.mxu0 0.0
      %519 = vmatprep.subr.mxu0 0.0
      %520 = vmatpush1.xpose.msra.mxu0 0.0
      %521 = vmatprep.subr.mxu0 0.0
      %522 = vmatpush1.xpose.msra.mxu0 0.0
      %523 = vmatprep.subr.mxu0 0.0
      %524 = vmatpush1.xpose.msra.mxu0 0.0
      %525 = vmatprep.subr.mxu0 0.0
      %526 = vmatpush1.xpose.msra.mxu0 0.0
      %527 = vmatprep.mubr.f32.mxu0 0.0
      %528 = vmatmul.mubr.f32.gmra.mrb[0].mxu0 %v458
      %v529 = vpop.f32.mrb[0].mxu0
      %v530 = vadd.f32 0.0, %v529
      %v531 = vpop.f32.mrb[0].mxu0
      %532 = vdwg.mxu0
      %v534 = vsel %vm304, %v299, 0
      %v537 = vsel %vm304, %v303, 0
      %539 = vmatprep.subr.mxu0 0.0
      %540 = vmatpush1.xpose.msra.mxu0 %v537
      %541 = vmatprep.subr.mxu0 0.0
      %542 = vmatpush1.xpose.msra.mxu0 0.0
      %543 = vmatprep.subr.mxu0 0.0
      %544 = vmatpush1.xpose.msra.mxu0 0.0
      %545 = vmatprep.subr.mxu0 0.0
      %546 = vmatpush1.xpose.msra.mxu0 0.0
      %547 = vmatprep.subr.mxu0 0.0
      %548 = vmatpush1.xpose.msra.mxu0 0.0
      %549 = vmatprep.subr.mxu0 0.0
      %550 = vmatpush1.xpose.msra.mxu0 0.0
      %551 = vmatprep.subr.mxu0 0.0
      %552 = vmatpush1.xpose.msra.mxu0 0.0
      %553 = vmatprep.subr.mxu0 0.0
      %554 = vmatpush1.xpose.msra.mxu0 0.0
      %555 = vmatprep.subr.mxu0 0.0
      %556 = vmatpush1.xpose.msra.mxu0 0.0
      %557 = vmatprep.subr.mxu0 0.0
      %558 = vmatpush1.xpose.msra.mxu0 0.0
      %559 = vmatprep.subr.mxu0 0.0
      %560 = vmatpush1.xpose.msra.mxu0 0.0
      %561 = vmatprep.subr.mxu0 0.0
      %562 = vmatpush1.xpose.msra.mxu0 0.0
      %563 = vmatprep.subr.mxu0 0.0
      %564 = vmatpush1.xpose.msra.mxu0 0.0
      %565 = vmatprep.subr.mxu0 0.0
      %566 = vmatpush1.xpose.msra.mxu0 0.0
      %567 = vmatprep.subr.mxu0 0.0
      %568 = vmatpush1.xpose.msra.mxu0 0.0
      %569 = vmatprep.subr.mxu0 0.0
      %570 = vmatpush1.xpose.msra.mxu0 0.0
      %571 = vmatprep.subr.mxu0 0.0
      %572 = vmatpush1.xpose.msra.mxu0 0.0
      %573 = vmatprep.subr.mxu0 0.0
      %574 = vmatpush1.xpose.msra.mxu0 0.0
      %575 = vmatprep.subr.mxu0 0.0
      %576 = vmatpush1.xpose.msra.mxu0 0.0
      %577 = vmatprep.subr.mxu0 0.0
      %578 = vmatpush1.xpose.msra.mxu0 0.0
      %579 = vmatprep.subr.mxu0 0.0
      %580 = vmatpush1.xpose.msra.mxu0 0.0
      %581 = vmatprep.subr.mxu0 0.0
      %582 = vmatpush1.xpose.msra.mxu0 0.0
      %583 = vmatprep.subr.mxu0 0.0
      %584 = vmatpush1.xpose.msra.mxu0 0.0
      %585 = vmatprep.subr.mxu0 0.0
      %586 = vmatpush1.xpose.msra.mxu0 0.0
      %587 = vmatprep.subr.mxu0 0.0
      %588 = vmatpush1.xpose.msra.mxu0 0.0
      %589 = vmatprep.subr.mxu0 0.0
      %590 = vmatpush1.xpose.msra.mxu0 0.0
      %591 = vmatprep.subr.mxu0 0.0
      %592 = vmatpush1.xpose.msra.mxu0 0.0
      %593 = vmatprep.subr.mxu0 0.0
      %594 = vmatpush1.xpose.msra.mxu0 0.0
      %595 = vmatprep.subr.mxu0 0.0
      %596 = vmatpush1.xpose.msra.mxu0 0.0
      %597 = vmatprep.subr.mxu0 0.0
      %598 = vmatpush1.xpose.msra.mxu0 0.0
      %599 = vmatprep.subr.mxu0 0.0
      %600 = vmatpush1.xpose.msra.mxu0 0.0
      %601 = vmatprep.subr.mxu0 0.0
      %602 = vmatpush1.xpose.msra.mxu0 0.0
      %603 = vmatprep.mubr.f32.mxu0 0.0
      %604 = vmatmul.mubr.f32.gmra.mrb[0].mxu0 %v534
      %v605 = vpop.f32.mrb[0].mxu0
      %v606 = vadd.f32 0.0, %v605
      %v607 = vpop.f32.mrb[0].mxu0
      %608 = vdwg.mxu0
      %v609 = vld [vmem:[#allocation2] sm:$0xff]
      %v610 = vld [vmem:[#allocation2 + $0x8] sm:$0xff]
      %v611 = vld [vmem:[#allocation2 + $0x10] sm:$0xff]
      %v612 = vld [vmem:[#allocation2 + $0x18] sm:$0xff]
      %v613 = vsel %vm304, %v378, -inf
      %614 = vmax.xlane.f32.xlu0 %v613
      %v615 = vpop.xlane.xlu0 %614
      %v616 = vsel %vm304, %v454, -inf
      %617 = vmax.xlane.f32.xlu0 %v616
      %v618 = vpop.xlane.xlu0 %617
      %v619 = vsel %vm304, %v530, -inf
      %620 = vmax.xlane.f32.xlu0 %v619
      %v621 = vpop.xlane.xlu0 %620
      %v622 = vsel %vm304, %v606, -inf
      %623 = vmax.xlane.f32.xlu0 %v622
      %v624 = vpop.xlane.xlu0 %623
      %v625 = vmax.f32 %v609, %v615
      %v626 = vmax.f32 %v610, %v618
      %v627 = vmax.f32 %v611, %v621
      %v628 = vmax.f32 %v612, %v624
      %v629 = vsub.f32 %v609, %v625
      %v630 = vsub.f32 %v610, %v626
      %v631 = vsub.f32 %v611, %v627
      %v632 = vsub.f32 %v612, %v628
      %v633 = vmul.f32 %v629, 1.442695
      %v634 = vpow.pop %v633
      %v635 = vmul.f32 %v630, 1.442695
      %v636 = vpow.pop %v635
      %v637 = vmul.f32 %v631, 1.442695
      %v638 = vpow.pop %v637
      %v639 = vmul.f32 %v632, 1.442695
      %v640 = vpow.pop %v639
      %642 = vset.pattern.permute.xlu0 0
      %643 = vperm.xlu0 %642, %v625
      %v644 = vpop.permute.xlu0 %643
      %647 = vset.pattern.permute.xlu0 0
      %648 = vperm.xlu0 %647, %v626
      %v649 = vpop.permute.xlu0 %648
      %652 = vset.pattern.permute.xlu0 0
      %653 = vperm.xlu0 %652, %v627
      %v654 = vpop.permute.xlu0 %653
      %657 = vset.pattern.permute.xlu0 0
      %658 = vperm.xlu0 %657, %v628
      %v659 = vpop.permute.xlu0 %658
      %v661 = vsub.f32 %v378, %v644
      %v662 = vsub.f32 %v454, %v649
      %v663 = vsub.f32 %v530, %v654
      %v664 = vsub.f32 %v606, %v659
      %v665 = vmul.f32 %v661, 1.442695
      %v666 = vpow.pop %v665
      %v667 = vmul.f32 %v662, 1.442695
      %v668 = vpow.pop %v667
      %v669 = vmul.f32 %v663, 1.442695
      %v670 = vpow.pop %v669
      %v671 = vmul.f32 %v664, 1.442695
      %v672 = vpow.pop %v671
      %v673 = vld [vmem:[#allocation3] sm:$0xff]
      %v674 = vld [vmem:[#allocation3 + $0x8] sm:$0xff]
      %v675 = vld [vmem:[#allocation3 + $0x10] sm:$0xff]
      %v676 = vld [vmem:[#allocation3 + $0x18] sm:$0xff]
      %v677 = vmul.f32 %v634, %v673
      %v678 = vmul.f32 %v636, %v674
      %v679 = vmul.f32 %v638, %v675
      %v680 = vmul.f32 %v640, %v676
      %v681 = vsel %vm304, %v666, 0.0
      %682 = vadd.xlane.f32.xlu0 %v681
      %v683 = vpop.xlane.xlu0 %682
      %v684 = vsel %vm304, %v668, 0.0
      %685 = vadd.xlane.f32.xlu0 %v684
      %v686 = vpop.xlane.xlu0 %685
      %v687 = vsel %vm304, %v670, 0.0
      %688 = vadd.xlane.f32.xlu0 %v687
      %v689 = vpop.xlane.xlu0 %688
      %v690 = vsel %vm304, %v672, 0.0
      %691 = vadd.xlane.f32.xlu0 %v690
      %v692 = vpop.xlane.xlu0 %691
      %v693 = vadd.f32 %v677, %v683
      %v694 = vadd.f32 %v678, %v686
      %v695 = vadd.f32 %v679, %v689
      %v696 = vadd.f32 %v680, %v692
      %vm697 = vcmask 7168
      %698 = vst.msk [vmem:[#allocation3] sm:$0xff] %vm697, %v693
      %699 = vst.msk [vmem:[#allocation3 + $0x8] sm:$0xff] %vm697, %v694
      %700 = vst.msk [vmem:[#allocation3 + $0x10] sm:$0xff] %vm697, %v695
      %701 = vst.msk [vmem:[#allocation3 + $0x18] sm:$0xff] %vm697, %v696
      %v702 = vld [vmem:[#allocation4] sm:$0xff]
      %v703 = vld [vmem:[#allocation4 + $0x8] sm:$0xff]
      %v704 = vld [vmem:[#allocation4 + $0x10] sm:$0xff]
      %v705 = vld [vmem:[#allocation4 + $0x18] sm:$0xff]
      %707 = vset.pattern.permute.xlu0 0
      %708 = vperm.xlu0 %707, %v634
      %v709 = vpop.permute.xlu0 %708
      %712 = vset.pattern.permute.xlu0 0
      %713 = vperm.xlu0 %712, %v636
      %v714 = vpop.permute.xlu0 %713
      %717 = vset.pattern.permute.xlu0 0
      %718 = vperm.xlu0 %717, %v638
      %v719 = vpop.permute.xlu0 %718
      %722 = vset.pattern.permute.xlu0 0
      %723 = vperm.xlu0 %722, %v640
      %v724 = vpop.permute.xlu0 %723
      %v726 = vmul.f32 %v709, %v702
      %v727 = vmul.f32 %v714, %v703
      %v728 = vmul.f32 %v719, %v704
      %v729 = vmul.f32 %v724, %v705
      %v730 = vld [vmem:[%s267] sm:$0xff]
      %v731 = vld [vmem:[%s267 + $0x8] sm:$0xff]
      %v732 = vld [vmem:[%s267 + $0x10] sm:$0xff]
      %v733 = vld [vmem:[%s267 + $0x18] sm:$0xff]
      %v735 = vsel %vm304, %v666, 0
      %737 = vmatprep.subr.mxu0 0.0
      %738 = vmatpush1.msra.mxu0 %v730
      %739 = vmatprep.subr.mxu0 0.0
      %740 = vmatpush1.msra.mxu0 0.0
      %741 = vmatprep.subr.mxu0 0.0
      %742 = vmatpush1.msra.mxu0 0.0
      %743 = vmatprep.subr.mxu0 0.0
      %744 = vmatpush1.msra.mxu0 0.0
      %745 = vmatprep.subr.mxu0 0.0
      %746 = vmatpush1.msra.mxu0 0.0
      %747 = vmatprep.subr.mxu0 0.0
      %748 = vmatpush1.msra.mxu0 0.0
      %749 = vmatprep.subr.mxu0 0.0
      %750 = vmatpush1.msra.mxu0 0.0
      %751 = vmatprep.subr.mxu0 0.0
      %752 = vmatpush1.msra.mxu0 0.0
      %753 = vmatprep.subr.mxu0 0.0
      %754 = vmatpush1.msra.mxu0 0.0
      %755 = vmatprep.subr.mxu0 0.0
      %756 = vmatpush1.msra.mxu0 0.0
      %757 = vmatprep.subr.mxu0 0.0
      %758 = vmatpush1.msra.mxu0 0.0
      %759 = vmatprep.subr.mxu0 0.0
      %760 = vmatpush1.msra.mxu0 0.0
      %761 = vmatprep.subr.mxu0 0.0
      %762 = vmatpush1.msra.mxu0 0.0
      %763 = vmatprep.subr.mxu0 0.0
      %764 = vmatpush1.msra.mxu0 0.0
      %765 = vmatprep.subr.mxu0 0.0
      %766 = vmatpush1.msra.mxu0 0.0
      %767 = vmatprep.subr.mxu0 0.0
      %768 = vmatpush1.msra.mxu0 0.0
      %769 = vmatprep.subr.mxu0 0.0
      %770 = vmatpush1.msra.mxu0 0.0
      %771 = vmatprep.subr.mxu0 0.0
      %772 = vmatpush1.msra.mxu0 0.0
      %773 = vmatprep.subr.mxu0 0.0
      %774 = vmatpush1.msra.mxu0 0.0
      %775 = vmatprep.subr.mxu0 0.0
      %776 = vmatpush1.msra.mxu0 0.0
      %777 = vmatprep.subr.mxu0 0.0
      %778 = vmatpush1.msra.mxu0 0.0
      %779 = vmatprep.subr.mxu0 0.0
      %780 = vmatpush1.msra.mxu0 0.0
      %781 = vmatprep.subr.mxu0 0.0
      %782 = vmatpush1.msra.mxu0 0.0
      %783 = vmatprep.subr.mxu0 0.0
      %784 = vmatpush1.msra.mxu0 0.0
      %785 = vmatprep.subr.mxu0 0.0
      %786 = vmatpush1.msra.mxu0 0.0
      %787 = vmatprep.subr.mxu0 0.0
      %788 = vmatpush1.msra.mxu0 0.0
      %789 = vmatprep.subr.mxu0 0.0
      %790 = vmatpush1.msra.mxu0 0.0
      %791 = vmatprep.subr.mxu0 0.0
      %792 = vmatpush1.msra.mxu0 0.0
      %793 = vmatprep.subr.mxu0 0.0
      %794 = vmatpush1.msra.mxu0 0.0
      %795 = vmatprep.subr.mxu0 0.0
      %796 = vmatpush1.msra.mxu0 0.0
      %797 = vmatprep.subr.mxu0 0.0
      %798 = vmatpush1.msra.mxu0 0.0
      %799 = vmatprep.subr.mxu0 0.0
      %800 = vmatpush1.msra.mxu0 0.0
      %801 = vmatprep.mubr.f32.mxu0 0.0
      %802 = vmatmul.mubr.f32.gmra.mrb[0].mxu0 %v735
      %v803 = vpop.f32.mrb[0].mxu0
      %v804 = vadd.f32 0.0, %v803
      %v805 = vpop.f32.mrb[0].mxu0
      %806 = vdwg.mxu0
      %v808 = vsel %vm304, %v668, 0
      %810 = vmatprep.subr.mxu0 0.0
      %811 = vmatpush1.msra.mxu0 %v731
      %812 = vmatprep.subr.mxu0 0.0
      %813 = vmatpush1.msra.mxu0 0.0
      %814 = vmatprep.subr.mxu0 0.0
      %815 = vmatpush1.msra.mxu0 0.0
      %816 = vmatprep.subr.mxu0 0.0
      %817 = vmatpush1.msra.mxu0 0.0
      %818 = vmatprep.subr.mxu0 0.0
      %819 = vmatpush1.msra.mxu0 0.0
      %820 = vmatprep.subr.mxu0 0.0
      %821 = vmatpush1.msra.mxu0 0.0
      %822 = vmatprep.subr.mxu0 0.0
      %823 = vmatpush1.msra.mxu0 0.0
      %824 = vmatprep.subr.mxu0 0.0
      %825 = vmatpush1.msra.mxu0 0.0
      %826 = vmatprep.subr.mxu0 0.0
      %827 = vmatpush1.msra.mxu0 0.0
      %828 = vmatprep.subr.mxu0 0.0
      %829 = vmatpush1.msra.mxu0 0.0
      %830 = vmatprep.subr.mxu0 0.0
      %831 = vmatpush1.msra.mxu0 0.0
      %832 = vmatprep.subr.mxu0 0.0
      %833 = vmatpush1.msra.mxu0 0.0
      %834 = vmatprep.subr.mxu0 0.0
      %835 = vmatpush1.msra.mxu0 0.0
      %836 = vmatprep.subr.mxu0 0.0
      %837 = vmatpush1.msra.mxu0 0.0
      %838 = vmatprep.subr.mxu0 0.0
      %839 = vmatpush1.msra.mxu0 0.0
      %840 = vmatprep.subr.mxu0 0.0
      %841 = vmatpush1.msra.mxu0 0.0
      %842 = vmatprep.subr.mxu0 0.0
      %843 = vmatpush1.msra.mxu0 0.0
      %844 = vmatprep.subr.mxu0 0.0
      %845 = vmatpush1.msra.mxu0 0.0
      %846 = vmatprep.subr.mxu0 0.0
      %847 = vmatpush1.msra.mxu0 0.0
      %848 = vmatprep.subr.mxu0 0.0
      %849 = vmatpush1.msra.mxu0 0.0
      %850 = vmatprep.subr.mxu0 0.0
      %851 = vmatpush1.msra.mxu0 0.0
      %852 = vmatprep.subr.mxu0 0.0
      %853 = vmatpush1.msra.mxu0 0.0
      %854 = vmatprep.subr.mxu0 0.0
      %855 = vmatpush1.msra.mxu0 0.0
      %856 = vmatprep.subr.mxu0 0.0
      %857 = vmatpush1.msra.mxu0 0.0
      %858 = vmatprep.subr.mxu0 0.0
      %859 = vmatpush1.msra.mxu0 0.0
      %860 = vmatprep.subr.mxu0 0.0
      %861 = vmatpush1.msra.mxu0 0.0
      %862 = vmatprep.subr.mxu0 0.0
      %863 = vmatpush1.msra.mxu0 0.0
      %864 = vmatprep.subr.mxu0 0.0
      %865 = vmatpush1.msra.mxu0 0.0
      %866 = vmatprep.subr.mxu0 0.0
      %867 = vmatpush1.msra.mxu0 0.0
      %868 = vmatprep.subr.mxu0 0.0
      %869 = vmatpush1.msra.mxu0 0.0
      %870 = vmatprep.subr.mxu0 0.0
      %871 = vmatpush1.msra.mxu0 0.0
      %872 = vmatprep.subr.mxu0 0.0
      %873 = vmatpush1.msra.mxu0 0.0
      %874 = vmatprep.mubr.f32.mxu0 0.0
      %875 = vmatmul.mubr.f32.gmra.mrb[0].mxu0 %v808
      %v876 = vpop.f32.mrb[0].mxu0
      %v877 = vadd.f32 0.0, %v876
      %v878 = vpop.f32.mrb[0].mxu0
      %879 = vdwg.mxu0
      %v881 = vsel %vm304, %v670, 0
      %883 = vmatprep.subr.mxu0 0.0
      %884 = vmatpush1.msra.mxu0 %v732
      %885 = vmatprep.subr.mxu0 0.0
      %886 = vmatpush1.msra.mxu0 0.0
      %887 = vmatprep.subr.mxu0 0.0
      %888 = vmatpush1.msra.mxu0 0.0
      %889 = vmatprep.subr.mxu0 0.0
      %890 = vmatpush1.msra.mxu0 0.0
      %891 = vmatprep.subr.mxu0 0.0
      %892 = vmatpush1.msra.mxu0 0.0
      %893 = vmatprep.subr.mxu0 0.0
      %894 = vmatpush1.msra.mxu0 0.0
      %895 = vmatprep.subr.mxu0 0.0
      %896 = vmatpush1.msra.mxu0 0.0
      %897 = vmatprep.subr.mxu0 0.0
      %898 = vmatpush1.msra.mxu0 0.0
      %899 = vmatprep.subr.mxu0 0.0
      %900 = vmatpush1.msra.mxu0 0.0
      %901 = vmatprep.subr.mxu0 0.0
      %902 = vmatpush1.msra.mxu0 0.0
      %903 = vmatprep.subr.mxu0 0.0
      %904 = vmatpush1.msra.mxu0 0.0
      %905 = vmatprep.subr.mxu0 0.0
      %906 = vmatpush1.msra.mxu0 0.0
      %907 = vmatprep.subr.mxu0 0.0
      %908 = vmatpush1.msra.mxu0 0.0
      %909 = vmatprep.subr.mxu0 0.0
      %910 = vmatpush1.msra.mxu0 0.0
      %911 = vmatprep.subr.mxu0 0.0
      %912 = vmatpush1.msra.mxu0 0.0
      %913 = vmatprep.subr.mxu0 0.0
      %914 = vmatpush1.msra.mxu0 0.0
      %915 = vmatprep.subr.mxu0 0.0
      %916 = vmatpush1.msra.mxu0 0.0
      %917 = vmatprep.subr.mxu0 0.0
      %918 = vmatpush1.msra.mxu0 0.0
      %919 = vmatprep.subr.mxu0 0.0
      %920 = vmatpush1.msra.mxu0 0.0
      %921 = vmatprep.subr.mxu0 0.0
      %922 = vmatpush1.msra.mxu0 0.0
      %923 = vmatprep.subr.mxu0 0.0
      %924 = vmatpush1.msra.mxu0 0.0
      %925 = vmatprep.subr.mxu0 0.0
      %926 = vmatpush1.msra.mxu0 0.0
      %927 = vmatprep.subr.mxu0 0.0
      %928 = vmatpush1.msra.mxu0 0.0
      %929 = vmatprep.subr.mxu0 0.0
      %930 = vmatpush1.msra.mxu0 0.0
      %931 = vmatprep.subr.mxu0 0.0
      %932 = vmatpush1.msra.mxu0 0.0
      %933 = vmatprep.subr.mxu0 0.0
      %934 = vmatpush1.msra.mxu0 0.0
      %935 = vmatprep.subr.mxu0 0.0
      %936 = vmatpush1.msra.mxu0 0.0
      %937 = vmatprep.subr.mxu0 0.0
      %938 = vmatpush1.msra.mxu0 0.0
      %939 = vmatprep.subr.mxu0 0.0
      %940 = vmatpush1.msra.mxu0 0.0
      %941 = vmatprep.subr.mxu0 0.0
      %942 = vmatpush1.msra.mxu0 0.0
      %943 = vmatprep.subr.mxu0 0.0
      %944 = vmatpush1.msra.mxu0 0.0
      %945 = vmatprep.subr.mxu0 0.0
      %946 = vmatpush1.msra.mxu0 0.0
      %947 = vmatprep.mubr.f32.mxu0 0.0
      %948 = vmatmul.mubr.f32.gmra.mrb[0].mxu0 %v881
      %v949 = vpop.f32.mrb[0].mxu0
      %v950 = vadd.f32 0.0, %v949
      %v951 = vpop.f32.mrb[0].mxu0
      %952 = vdwg.mxu0
      %v954 = vsel %vm304, %v672, 0
      %956 = vmatprep.subr.mxu0 0.0
      %957 = vmatpush1.msra.mxu0 %v733
      %958 = vmatprep.subr.mxu0 0.0
      %959 = vmatpush1.msra.mxu0 0.0
      %960 = vmatprep.subr.mxu0 0.0
      %961 = vmatpush1.msra.mxu0 0.0
      %962 = vmatprep.subr.mxu0 0.0
      %963 = vmatpush1.msra.mxu0 0.0
      %964 = vmatprep.subr.mxu0 0.0
      %965 = vmatpush1.msra.mxu0 0.0
      %966 = vmatprep.subr.mxu0 0.0
      %967 = vmatpush1.msra.mxu0 0.0
      %968 = vmatprep.subr.mxu0 0.0
      %969 = vmatpush1.msra.mxu0 0.0
      %970 = vmatprep.subr.mxu0 0.0
      %971 = vmatpush1.msra.mxu0 0.0
      %972 = vmatprep.subr.mxu0 0.0
      %973 = vmatpush1.msra.mxu0 0.0
      %974 = vmatprep.subr.mxu0 0.0
      %975 = vmatpush1.msra.mxu0 0.0
      %976 = vmatprep.subr.mxu0 0.0
      %977 = vmatpush1.msra.mxu0 0.0
      %978 = vmatprep.subr.mxu0 0.0
      %979 = vmatpush1.msra.mxu0 0.0
      %980 = vmatprep.subr.mxu0 0.0
      %981 = vmatpush1.msra.mxu0 0.0
      %982 = vmatprep.subr.mxu0 0.0
      %983 = vmatpush1.msra.mxu0 0.0
      %984 = vmatprep.subr.mxu0 0.0
      %985 = vmatpush1.msra.mxu0 0.0
      %986 = vmatprep.subr.mxu0 0.0
      %987 = vmatpush1.msra.mxu0 0.0
      %988 = vmatprep.subr.mxu0 0.0
      %989 = vmatpush1.msra.mxu0 0.0
      %990 = vmatprep.subr.mxu0 0.0
      %991 = vmatpush1.msra.mxu0 0.0
      %992 = vmatprep.subr.mxu0 0.0
      %993 = vmatpush1.msra.mxu0 0.0
      %994 = vmatprep.subr.mxu0 0.0
      %995 = vmatpush1.msra.mxu0 0.0
      %996 = vmatprep.subr.mxu0 0.0
      %997 = vmatpush1.msra.mxu0 0.0
      %998 = vmatprep.subr.mxu0 0.0
      %999 = vmatpush1.msra.mxu0 0.0
      %1000 = vmatprep.subr.mxu0 0.0
      %1001 = vmatpush1.msra.mxu0 0.0
      %1002 = vmatprep.subr.mxu0 0.0
      %1003 = vmatpush1.msra.mxu0 0.0
      %1004 = vmatprep.subr.mxu0 0.0
      %1005 = vmatpush1.msra.mxu0 0.0
      %1006 = vmatprep.subr.mxu0 0.0
      %1007 = vmatpush1.msra.mxu0 0.0
      %1008 = vmatprep.subr.mxu0 0.0
      %1009 = vmatpush1.msra.mxu0 0.0
      %1010 = vmatprep.subr.mxu0 0.0
      %1011 = vmatpush1.msra.mxu0 0.0
      %1012 = vmatprep.subr.mxu0 0.0
      %1013 = vmatpush1.msra.mxu0 0.0
      %1014 = vmatprep.subr.mxu0 0.0
      %1015 = vmatpush1.msra.mxu0 0.0
      %1016 = vmatprep.subr.mxu0 0.0
      %1017 = vmatpush1.msra.mxu0 0.0
      %1018 = vmatprep.subr.mxu0 0.0
      %1019 = vmatpush1.msra.mxu0 0.0
      %1020 = vmatprep.mubr.f32.mxu0 0.0
      %1021 = vmatmul.mubr.f32.gmra.mrb[0].mxu0 %v954
      %v1022 = vpop.f32.mrb[0].mxu0
      %v1023 = vadd.f32 0.0, %v1022
      %v1024 = vpop.f32.mrb[0].mxu0
      %1025 = vdwg.mxu0
      %v1026 = vadd.f32 %v726, %v804
      %v1027 = vadd.f32 %v727, %v877
      %v1028 = vadd.f32 %v728, %v950
      %v1029 = vadd.f32 %v729, %v1023
      %1030 = vst.msk [vmem:[#allocation4] sm:$0xff] %vm304, %v1026
      %1031 = vst.msk [vmem:[#allocation4 + $0x8] sm:$0xff] %vm304, %v1027
      %1032 = vst.msk [vmem:[#allocation4 + $0x10] sm:$0xff] %vm304, %v1028
      %1033 = vst.msk [vmem:[#allocation4 + $0x18] sm:$0xff] %vm304, %v1029
      %1034 = vst.msk [vmem:[#allocation2] sm:$0xff] %vm697, %v625
      %1035 = vst.msk [vmem:[#allocation2 + $0x8] sm:$0xff] %vm697, %v626
      %1036 = vst.msk [vmem:[#allocation2 + $0x10] sm:$0xff] %vm697, %v627
      %1037 = vst.msk [vmem:[#allocation2 + $0x18] sm:$0xff] %vm697, %v628
      // Predicated region
      $region37: #{self_attention.4} parent=31 // pred_check
        %p1038 = pneg %p278
      $region38: #{self_attention.4} parent=31 // pred_check_branch
        %1040 = sbr.rel (%p1038) target = $region40
      $region39: #{self_attention.4} parent=31 // pred_region
        %v1041 = vld [vmem:[#allocation3] sm:$0xff]
        %v1042 = vld [vmem:[#allocation3 + $0x8] sm:$0xff]
        %v1043 = vld [vmem:[#allocation3 + $0x10] sm:$0xff]
        %v1044 = vld [vmem:[#allocation3 + $0x18] sm:$0xff]
        %v1045 = vrcp.pop %v1041
        %v1046 = vrcp.pop %v1042
        %v1047 = vrcp.pop %v1043
        %v1048 = vrcp.pop %v1044
        %v1049 = vld [vmem:[#allocation4] sm:$0xff]
        %v1050 = vld [vmem:[#allocation4 + $0x8] sm:$0xff]
        %v1051 = vld [vmem:[#allocation4 + $0x10] sm:$0xff]
        %v1052 = vld [vmem:[#allocation4 + $0x18] sm:$0xff]
        %1054 = vset.pattern.permute.xlu0 0
        %1055 = vperm.xlu0 %1054, %v1045
        %v1056 = vpop.permute.xlu0 %1055
        %1059 = vset.pattern.permute.xlu0 0
        %1060 = vperm.xlu0 %1059, %v1046
        %v1061 = vpop.permute.xlu0 %1060
        %1064 = vset.pattern.permute.xlu0 0
        %1065 = vperm.xlu0 %1064, %v1047
        %v1066 = vpop.permute.xlu0 %1065
        %1069 = vset.pattern.permute.xlu0 0
        %1070 = vperm.xlu0 %1069, %v1048
        %v1071 = vpop.permute.xlu0 %1070
        %v1073 = vmul.f32 %v1049, %v1056
        %v1074 = vmul.f32 %v1050, %v1061
        %v1075 = vmul.f32 %v1051, %v1066
        %v1076 = vmul.f32 %v1052, %v1071
        %1077 = vst.msk [vmem:[%s276] sm:$0xff] %vm304, %v1073
        %1078 = vst.msk [vmem:[%s276 + $0x8] sm:$0xff] %vm304, %v1074
        %1079 = vst.msk [vmem:[%s276 + $0x10] sm:$0xff] %vm304, %v1075
        %1080 = vst.msk [vmem:[%s276 + $0x18] sm:$0xff] %vm304, %v1076
      $region40: #{self_attention.4} parent=31 // pred_fallthru
        _
      %s1081 = smul.u32 4, %s19
      %p1082 = scmp.lt.s32.totalorder %s1081, 7
      %s1083 = scalar_select %p1082, %s1081, 7
      %p1084 = scmp.lt.s32.totalorder %s20, 0
      %s1085 = scalar_select %p1084, %s20, 0
      %s1086 = sadd.s32 %s1085, %s1083
      %s1087 = smul.addr %s1086, 8
      %s1088 = scalar_lea.vmem %s3, %s1087
      // Predicated region
      $region41: #{self_attention.4} parent=31 // pred_check
        %p1089 = pneg %p137
      $region42: #{self_attention.4} parent=31 // pred_check_branch
        %1091 = sbr.rel (%p1089) target = $region44
      $region43: #{self_attention.4} parent=31 // pred_region
        %s1092 = smul.u32 4, %s19
      $region44: #{self_attention.4} parent=31 // pred_fallthru
        _
    $region32: #{self_attention.4} parent=5 // pred_fallthru
      _
    %p1093 = scmp.le.s32.totalorder 2, %s9
    // Predicated region
    $region45: #{self_attention.4} parent=5 // pred_check
      %p1094 = pneg %p1093
    $region46: #{self_attention.4} parent=5 // pred_check_branch
      %1096 = sbr.rel (%p1094) target = $region48
    $region47: #{self_attention.4} parent=5 // pred_region
      %s1097 = ssub.s32 %s9, 2
      // Predicated region
      $region49: #{self_attention.4} parent=47 // pred_check
        %p1098 = pneg %p143
      $region50: #{self_attention.4} parent=47 // pred_check_branch
        %1100 = sbr.rel (%p1098) target = $region52
      $region51: #{self_attention.4} parent=47 // pred_region
        %s1101 = smul.u32 4, %s22
        %p1102 = scmp.lt.s32.totalorder %s1101, 7
        %s1103 = scalar_select %p1102, %s1101, 7
        %p1104 = scmp.lt.s32.totalorder %s23, 0
        %s1105 = scalar_select %p1104, %s23, 0
        %s1106 = sadd.s32 %s1105, %s1103
        %s1107 = smul.addr %s1106, 8
        %s1108 = scalar_lea.vmem %s3, %s1107
      $region52: #{self_attention.4} parent=47 // pred_fallthru
        _
    $region48: #{self_attention.4} parent=5 // pred_fallthru
      _
  $region6: #{self_attention.4} parent=0 // loop_footer
    %s13 = sadd.s32 1, %s9
  $region7: #{self_attention.4} parent=0 // loop_footer_branch
    %8 = sbr.rel target = $region3
  $region8: #{self_attention.4} parent=0 // loop_exit
    _

</llo_original>
